<compile_context>
chip_gen: v7x
topology: tpu7x:2x2x1
jax: 0.10.0
libtpu: 0.0.40
codegen_flags: <defaults>
</compile_context>

<pallas_src>
import jax
import jax.numpy as jnp
from jax.experimental import pallas as pl
from jax.experimental.pallas import tpu as pltpu

_HI = jax.lax.Precision.HIGHEST


def _dot(a, b):
    return jnp.dot(a, b, preferred_element_type=jnp.float32, precision=_HI)


# ---------------------------------------------------------------------------
# Pallas kernels
# ---------------------------------------------------------------------------
def _stem_blk1_kernel(p_ref, w1_ref, s1_ref, b1_ref, w2_ref, s2_ref, b2_ref,
                      x1_ref, x2_ref):
    """x1 = relu(im2col(x) @ W1 * s1 + b1);  x2 = relu(x1 @ W2 * s2 + b2)."""
    h = _dot(p_ref[...], w1_ref[...])
    h = jnp.maximum(h * s1_ref[...] + b1_ref[...], 0.0)
    x1_ref[...] = h.astype(x1_ref.dtype)
    g = _dot(h, w2_ref[...])
    g = jnp.maximum(g * s2_ref[...] + b2_ref[...], 0.0)
    x2_ref[...] = g.astype(x2_ref.dtype)


def _block_mid_kernel(p_ref, wg_ref, sg_ref, bg_ref, w3_ref, s3_ref, b3_ref,
                      xs_ref, wsc_ref, ssc_ref, bsc_ref, o_ref):
    """Grouped conv2 (+BN+ReLU) -> conv3 (+BN) -> + shortcut(1x1+BN) -> ReLU."""
    h = _dot(p_ref[...], wg_ref[...])                       # [M, 160]
    h = jnp.maximum(h * sg_ref[...] + bg_ref[...], 0.0)
    y = _dot(h, w3_ref[...]) * s3_ref[...] + b3_ref[...]    # [M, 320]
    r = _dot(xs_ref[...], wsc_ref[...]) * ssc_ref[...] + bsc_ref[...]
    o_ref[...] = jnp.maximum(y + r, 0.0).astype(o_ref.dtype)


def _head_pool_fc_kernel(x_ref, w_ref, s_ref, b_ref, pool_ref, fcw_ref,
                         fcb_ref, o_ref):
    """relu(x @ W2 * s + b) -> global average pool (as matmul) -> fc1."""
    h = _dot(x_ref[...], w_ref[...])                        # [M, 1280]
    h = jnp.maximum(h * s_ref[...] + b_ref[...], 0.0)
    pooled = _dot(pool_ref[...], h)                         # [B, 1280]
    o_ref[...] = (_dot(pooled, fcw_ref[...]) + fcb_ref[...]).astype(o_ref.dtype)


def _pick_row_tile(m):
    if m <= 256:
        return m
    for t in (256, 128, 64, 32, 16, 8):
        if m % t == 0:
            return t
    return m


# ---------------------------------------------------------------------------
# Kernel wrappers
# ---------------------------------------------------------------------------
def stem_block1(patches, w1, s1, b1, w2, s2, b2):
    m, k1 = patches.shape
    n1 = w1.shape[1]
    n2 = w2.shape[1]
    tm = _pick_row_tile(m)
    grid = (m // tm,)
    return pl.pallas_call(
        _stem_blk1_kernel,
        out_shape=(jax.ShapeDtypeStruct((m, n1), jnp.float32),
                   jax.ShapeDtypeStruct((m, n2), jnp.float32)),
        grid_spec=pltpu.PrefetchScalarGridSpec(
            num_scalar_prefetch=0,
            grid=grid,
            in_specs=[
                pl.BlockSpec((tm, k1), lambda i: (i, 0)),
                pl.BlockSpec((k1, n1), lambda i: (0, 0)),
                pl.BlockSpec((1, n1), lambda i: (0, 0)),
                pl.BlockSpec((1, n1), lambda i: (0, 0)),
                pl.BlockSpec((n1, n2), lambda i: (0, 0)),
                pl.BlockSpec((1, n2), lambda i: (0, 0)),
                pl.BlockSpec((1, n2), lambda i: (0, 0)),
            ],
            out_specs=[
                pl.BlockSpec((tm, n1), lambda i: (i, 0)),
                pl.BlockSpec((tm, n2), lambda i: (i, 0)),
            ],
        ),
        compiler_params=pltpu.CompilerParams(
            dimension_semantics=("parallel",)),
    )(patches, w1,
      s1.reshape(1, n1).astype(jnp.float32), b1.reshape(1, n1).astype(jnp.float32),
      w2,
      s2.reshape(1, n2).astype(jnp.float32), b2.reshape(1, n2).astype(jnp.float32))


def block_mid(patches, wg, sg, bg, w3, s3, b3, xs, wsc, ssc, bsc):
    m, kg = patches.shape
    ng = wg.shape[1]
    n3 = w3.shape[1]
    ks = xs.shape[1]
    return pl.pallas_call(
        _block_mid_kernel,
        out_shape=jax.ShapeDtypeStruct((m, n3), jnp.float32),
        grid_spec=pltpu.PrefetchScalarGridSpec(
            num_scalar_prefetch=0,
            grid=(1,),
            in_specs=[
                pl.BlockSpec((m, kg), lambda i: (0, 0)),
                pl.BlockSpec((kg, ng), lambda i: (0, 0)),
                pl.BlockSpec((1, ng), lambda i: (0, 0)),
                pl.BlockSpec((1, ng), lambda i: (0, 0)),
                pl.BlockSpec((ng, n3), lambda i: (0, 0)),
                pl.BlockSpec((1, n3), lambda i: (0, 0)),
                pl.BlockSpec((1, n3), lambda i: (0, 0)),
                pl.BlockSpec((m, ks), lambda i: (0, 0)),
                pl.BlockSpec((ks, n3), lambda i: (0, 0)),
                pl.BlockSpec((1, n3), lambda i: (0, 0)),
                pl.BlockSpec((1, n3), lambda i: (0, 0)),
            ],
            out_specs=pl.BlockSpec((m, n3), lambda i: (0, 0)),
        ),
        compiler_params=pltpu.CompilerParams(
            dimension_semantics=("arbitrary",)),
    )(patches, wg,
      sg.reshape(1, ng).astype(jnp.float32), bg.reshape(1, ng).astype(jnp.float32),
      w3,
      s3.reshape(1, n3).astype(jnp.float32), b3.reshape(1, n3).astype(jnp.float32),
      xs, wsc,
      ssc.reshape(1, n3).astype(jnp.float32), bsc.reshape(1, n3).astype(jnp.float32))


def head_pool_fc(x, w, s, b, pool_mat, fcw, fcb):
    m, k = x.shape
    n = w.shape[1]
    bsz = pool_mat.shape[0]
    nc = fcw.shape[1]
    return pl.pallas_call(
        _head_pool_fc_kernel,
        out_shape=jax.ShapeDtypeStruct((bsz, nc), jnp.float32),
        grid_spec=pltpu.PrefetchScalarGridSpec(
            num_scalar_prefetch=0,
            grid=(1,),
            in_specs=[
                pl.BlockSpec((m, k), lambda i: (0, 0)),
                pl.BlockSpec((k, n), lambda i: (0, 0)),
                pl.BlockSpec((1, n), lambda i: (0, 0)),
                pl.BlockSpec((1, n), lambda i: (0, 0)),
                pl.BlockSpec((bsz, m), lambda i: (0, 0)),
                pl.BlockSpec((n, nc), lambda i: (0, 0)),
                pl.BlockSpec((1, nc), lambda i: (0, 0)),
            ],
            out_specs=pl.BlockSpec((bsz, nc), lambda i: (0, 0)),
        ),
        compiler_params=pltpu.CompilerParams(
            dimension_semantics=("arbitrary",)),
    )(x, w,
      s.reshape(1, n).astype(jnp.float32), b.reshape(1, n).astype(jnp.float32),
      pool_mat, fcw, fcb.reshape(1, nc).astype(jnp.float32))


# ---------------------------------------------------------------------------
# Wrapper-side layout plumbing (XLA): im2col, weight reshapes, BN folding
# ---------------------------------------------------------------------------
def _fold_bn(bn, eps=1e-5):
    gamma, beta, mean, var = bn
    scale = gamma / jnp.sqrt(var + eps)
    bias = beta - mean * scale
    return scale, bias


def _im2col_3x3(x_nhwc, stride):
    b, h, w, c = x_nhwc.shape
    xp = jnp.pad(x_nhwc, ((0, 0), (1, 1), (1, 1), (0, 0)))
    ho = (h + 2 - 3) // stride + 1
    wo = (w + 2 - 3) // stride + 1
    cols = []
    for dh in range(3):
        for dw in range(3):
            cols.append(xp[:, dh:dh + (ho - 1) * stride + 1:stride,
                           dw:dw + (wo - 1) * stride + 1:stride, :])
    patches = jnp.concatenate(cols, axis=-1)          # [b, ho, wo, 9*c]
    return patches.reshape(b * ho * wo, 9 * c), (ho, wo)


def _conv3x3_w_to_mat(w_oihw):
    cout, cin = w_oihw.shape[0], w_oihw.shape[1]
    return jnp.transpose(w_oihw, (2, 3, 1, 0)).reshape(9 * cin, cout)


def _conv1x1_w_to_mat(w_oihw):
    cout, cin = w_oihw.shape[0], w_oihw.shape[1]
    return w_oihw.reshape(cout, cin).T


def _grouped_conv_to_dense(wg, groups):
    """Grouped conv weight [Cout, Cin/g, kh, kw] -> block-diagonal dense weight."""
    cout, ci_per, kh, kw = wg.shape
    co_per = cout // groups
    cin = ci_per * groups
    wg_r = wg.reshape(groups, co_per, ci_per, kh, kw)
    eye = jnp.eye(groups, dtype=wg.dtype)
    dense = jnp.einsum('gj,goiyx->gojiyx', eye, wg_r)
    return dense.reshape(cout, cin, kh, kw)


# ---------------------------------------------------------------------------
# _MobileNetV2 forward (Pallas path)
# cfg = [(expansion=5, out_planes=32, num_blocks=1, stride=2)], num_classes=10:
#   Block(32, cardinality=32, bottleneck_width=5, stride=2) -> group_width=160,
#   block output channels = 2*160 = 320, matching the fixed conv2 (320 -> 1280).
# ---------------------------------------------------------------------------
def mobilenet_forward_pallas(x_nchw, p, *, groups=32):
    x = jnp.transpose(x_nchw, (0, 2, 3, 1)).astype(jnp.float32)   # NHWC (channels -> lanes)
    b = x.shape[0]

    # Kernel 1: stem conv1(3x3,s1,p1)+bn1+relu fused with Block.conv1(1x1)+bn1+relu
    s1, b1 = _fold_bn(p['bn1'])
    sb1, bb1 = _fold_bn(p['blk_bn1'])
    patches1, (ho, wo) = _im2col_3x3(x, stride=1)
    x1_flat, x2_flat = stem_block1(
        patches1, _conv3x3_w_to_mat(p['conv1_w']), s1, b1,
        _conv1x1_w_to_mat(p['blk_conv1_w']), sb1, bb1)
    x1 = x1_flat.reshape(b, ho, wo, -1)                            # [B,8,8,32]
    x2 = x2_flat.reshape(b, ho, wo, -1)                            # [B,8,8,160]

    # Kernel 2: Block.conv2 (grouped 3x3, stride 2)+bn2+relu, conv3(1x1)+bn3,
    #           shortcut 1x1(stride 2)+bn, residual add, relu
    stride = 2
    patches2, (ho2, wo2) = _im2col_3x3(x2, stride=stride)
    w_dense = _grouped_conv_to_dense(p['blk_conv2_w'], groups)
    sg, bg = _fold_bn(p['blk_bn2'])
    s3, b3 = _fold_bn(p['blk_bn3'])
    ssc, bsc = _fold_bn(p['sc_bn'])
    xs = x1[:, ::stride, ::stride, :].reshape(b * ho2 * wo2, -1)   # [B*16,32]
    y3 = block_mid(patches2, _conv3x3_w_to_mat(w_dense), sg, bg,
                   _conv1x1_w_to_mat(p['blk_conv3_w']), s3, b3,
                   xs, _conv1x1_w_to_mat(p['sc_conv_w']), ssc, bsc)  # [B*16,320]

    # Kernel 3: head conv2(1x1,320->1280)+bn2+relu + avg_pool2d(4) + flatten + fc1
    s2, b2 = _fold_bn(p['bn2'])
    npos = ho2 * wo2
    pool_mat = jnp.kron(jnp.eye(b, dtype=jnp.float32),
                        jnp.ones((1, npos), jnp.float32)) / float(npos)  # [B, B*npos]
    logits = head_pool_fc(y3, _conv1x1_w_to_mat(p['conv2_w']), s2, b2,
                          pool_mat, p['fc_w'].T, p['fc_b'])
    return logits


# ---------------------------------------------------------------------------
# Pure-JAX reference (mirrors the PyTorch forward, inference-mode BN)
# ---------------------------------------------------------------------------
def _conv_ref(x, w, stride=1, padding=0, groups=1):
    return jax.lax.conv_general_dilated(
        x, w,
        window_strides=(stride, stride),
        padding=((padding, padding), (padding, padding)),
        dimension_numbers=('NCHW', 'OIHW', 'NCHW'),
        feature_group_count=groups,
        precision=_HI)


def mobilenet_forward_ref(x, p, *, groups=32):
    eps = 1e-5

    def bn(h, params):
        gamma, beta, mean, var = params
        sh = (1, -1, 1, 1)
        return ((h - mean.reshape(sh)) / jnp.sqrt(var.reshape(sh) + eps)
                * gamma.reshape(sh) + beta.reshape(sh))

    out = jax.nn.relu(bn(_conv_ref(x, p['conv1_w'], stride=1, padding=1), p['bn1']))
    h = jax.nn.relu(bn(_conv_ref(out, p['blk_conv1_w']), p['blk_bn1']))
    h = jax.nn.relu(bn(_conv_ref(h, p['blk_conv2_w'], stride=2, padding=1, groups=groups),
                       p['blk_bn2']))
    h = bn(_conv_ref(h, p['blk_conv3_w']), p['blk_bn3'])
    sc = bn(_conv_ref(out, p['sc_conv_w'], stride=2), p['sc_bn'])
    out = jax.nn.relu(h + sc)
    out = jax.nn.relu(bn(_conv_ref(out, p['conv2_w']), p['bn2']))
    out = jnp.mean(out, axis=(2, 3))                 # F.avg_pool2d(out, 4) on 4x4 + flatten
    return jnp.dot(out, p['fc_w'].T, precision=_HI) + p['fc_b']


# ---------------------------------------------------------------------------
# Deterministic parameters
# ---------------------------------------------------------------------------
def init_params(key, num_classes=10):
    ks = jax.random.split(key, 16)

    def conv_w(k, shape):
        fan_in = shape[1] * shape[2] * shape[3]
        return jax.random.normal(k, shape, jnp.float32) * (fan_in ** -0.5)

    def bn_p(k, c):
        k1, k2, k3, k4 = jax.random.split(k, 4)
        gamma = 1.0 + 0.1 * jax.random.normal(k1, (c,), jnp.float32)
        beta = 0.1 * jax.random.normal(k2, (c,), jnp.float32)
        mean = 0.1 * jax.random.normal(k3, (c,), jnp.float32)
        var = jax.random.uniform(k4, (c,), jnp.float32, 0.5, 1.5)
        return (gamma, beta, mean, var)

    return {
        'conv1_w': conv_w(ks[0], (32, 3, 3, 3)),
        'bn1': bn_p(ks[1], 32),
        'blk_conv1_w': conv_w(ks[2], (160, 32, 1, 1)),
        'blk_bn1': bn_p(ks[3], 160),
        'blk_conv2_w': conv_w(ks[4], (160, 5, 3, 3)),    # groups=32 -> 5 in-ch per group
        'blk_bn2': bn_p(ks[5], 160),
        'blk_conv3_w': conv_w(ks[6], (320, 160, 1, 1)),
        'blk_bn3': bn_p(ks[7], 320),
        'sc_conv_w': conv_w(ks[8], (320, 32, 1, 1)),
        'sc_bn': bn_p(ks[9], 320),
        'conv2_w': conv_w(ks[10], (1280, 320, 1, 1)),
        'bn2': bn_p(ks[11], 1280),
        'fc_w': jax.random.normal(ks[12], (num_classes, 1280), jnp.float32) * (1280 ** -0.5),
        'fc_b': 0.1 * jax.random.normal(ks[13], (num_classes,), jnp.float32),
    }


if __name__ == "__main__":
    root = jax.random.PRNGKey(0)
    k_x, k_p = jax.random.split(root)

    # Small shapes consistent with the module: input must have 3 channels, and
    # spatial 8 with the single stride-2 block yields 4x4 so avg_pool2d(4) ->
    # 1x1 and the flatten feeds fc1(1280, num_classes) exactly.
    batch, chans, height, width = 2, 3, 8, 8
    num_classes = 10
    x = jax.random.normal(k_x, (batch, chans, height, width), dtype=jnp.float32)
    params = init_params(k_p, num_classes=num_classes)

    out = mobilenet_forward_pallas(x, params)
    out = jax.block_until_ready(out)
    assert out.shape == (batch, num_classes)
    assert out.dtype == jnp.float32

    ref = mobilenet_forward_ref(x, params)
    max_err = float(jnp.max(jnp.abs(out - ref)))
    assert jnp.allclose(out, ref, rtol=5e-3, atol=5e-3), \
        f"mismatch vs reference (max abs err {max_err})"

    print("KERNEL_OK")
</pallas_src>

<mosaic_0001>
module attributes {stable_mosaic.version = 11 : i64} {
  func.func @_stem_blk1_kernel(%arg0: i32, %arg1: memref<128x27xf32, #tpu.memory_space<vmem>>, %arg2: memref<27x32xf32, #tpu.memory_space<vmem>>, %arg3: memref<1x32xf32, #tpu.memory_space<vmem>>, %arg4: memref<1x32xf32, #tpu.memory_space<vmem>>, %arg5: memref<32x160xf32, #tpu.memory_space<vmem>>, %arg6: memref<1x160xf32, #tpu.memory_space<vmem>>, %arg7: memref<1x160xf32, #tpu.memory_space<vmem>>, %arg8: memref<128x32xf32, #tpu.memory_space<vmem>>, %arg9: memref<128x160xf32, #tpu.memory_space<vmem>>) attributes {dimension_semantics = [#tpu.dimension_semantics<parallel>], iteration_bounds = array<i64: 1>, scalar_prefetch = 0 : i64, scratch_operands = 0 : i64, tpu.core_type = #tpu.core_type<tc>, window_params = [{transform_indices = @transform_0, window_bounds = array<i64: 128, 27>}, {pipeline_mode = #tpu.pipeline_mode<synchronous>, transform_indices = @transform_1, window_bounds = array<i64: 27, 32>}, {pipeline_mode = #tpu.pipeline_mode<synchronous>, transform_indices = @transform_2, window_bounds = array<i64: 1, 32>}, {pipeline_mode = #tpu.pipeline_mode<synchronous>, transform_indices = @transform_3, window_bounds = array<i64: 1, 32>}, {pipeline_mode = #tpu.pipeline_mode<synchronous>, transform_indices = @transform_4, window_bounds = array<i64: 32, 160>}, {pipeline_mode = #tpu.pipeline_mode<synchronous>, transform_indices = @transform_5, window_bounds = array<i64: 1, 160>}, {pipeline_mode = #tpu.pipeline_mode<synchronous>, transform_indices = @transform_6, window_bounds = array<i64: 1, 160>}, {transform_indices = @transform_7, window_bounds = array<i64: 128, 32>}, {transform_indices = @transform_8, window_bounds = array<i64: 128, 160>}]} {
    %c0 = arith.constant 0 : index
    %c0_0 = arith.constant 0 : index
    %0 = vector.load %arg1[%c0, %c0_0] : memref<128x27xf32, #tpu.memory_space<vmem>>, vector<128x27xf32>
    %c0_1 = arith.constant 0 : index
    %c0_2 = arith.constant 0 : index
    %1 = vector.load %arg2[%c0_1, %c0_2] : memref<27x32xf32, #tpu.memory_space<vmem>>, vector<27x32xf32>
    %cst = arith.constant dense<0.000000e+00> : vector<128x32xf32>
    %2 = tpu.matmul %0, %1, %cst {dimension_numbers = #tpu.dot_dimension_numbers<[1], [0], [0], [1], [0, 0, 1, 1], [], []>, precision = #tpu.contract_precision<fp32>} : vector<128x27xf32>, vector<27x32xf32>, vector<128x32xf32> -> vector<128x32xf32>
    %c0_3 = arith.constant 0 : index
    %c0_4 = arith.constant 0 : index
    %3 = vector.load %arg3[%c0_3, %c0_4] : memref<1x32xf32, #tpu.memory_space<vmem>>, vector<1x32xf32>
    %4 = vector.broadcast %3 : vector<1x32xf32> to vector<128x32xf32>
    %5 = arith.mulf %2, %4 : vector<128x32xf32>
    %c0_5 = arith.constant 0 : index
    %c0_6 = arith.constant 0 : index
    %6 = vector.load %arg4[%c0_5, %c0_6] : memref<1x32xf32, #tpu.memory_space<vmem>>, vector<1x32xf32>
    %7 = vector.broadcast %6 : vector<1x32xf32> to vector<128x32xf32>
    %8 = arith.addf %5, %7 : vector<128x32xf32>
    %cst_7 = arith.constant 0.000000e+00 : f32
    %9 = vector.broadcast %cst_7 : f32 to vector<128x32xf32>
    %10 = arith.maximumf %8, %9 : vector<128x32xf32>
    %c0_8 = arith.constant 0 : index
    %c0_9 = arith.constant 0 : index
    %11 = vector.load %arg8[%c0_8, %c0_9] : memref<128x32xf32, #tpu.memory_space<vmem>>, vector<128x32xf32>
    tpu.vector_store %arg8[%c0_8, %c0_9], %10 {strides = array<i32>} : memref<128x32xf32, #tpu.memory_space<vmem>>, vector<128x32xf32>,
    %c0_10 = arith.constant 0 : index
    %c0_11 = arith.constant 0 : index
    %12 = vector.load %arg5[%c0_10, %c0_11] : memref<32x160xf32, #tpu.memory_space<vmem>>, vector<32x160xf32>
    %cst_12 = arith.constant dense<0.000000e+00> : vector<128x160xf32>
    %13 = tpu.matmul %10, %12, %cst_12 {dimension_numbers = #tpu.dot_dimension_numbers<[1], [0], [0], [1], [0, 0, 1, 1], [], []>, precision = #tpu.contract_precision<fp32>} : vector<128x32xf32>, vector<32x160xf32>, vector<128x160xf32> -> vector<128x160xf32>
    %c0_13 = arith.constant 0 : index
    %c0_14 = arith.constant 0 : index
    %14 = vector.load %arg6[%c0_13, %c0_14] : memref<1x160xf32, #tpu.memory_space<vmem>>, vector<1x160xf32>
    %15 = vector.broadcast %14 : vector<1x160xf32> to vector<128x160xf32>
    %16 = arith.mulf %13, %15 : vector<128x160xf32>
    %c0_15 = arith.constant 0 : index
    %c0_16 = arith.constant 0 : index
    %17 = vector.load %arg7[%c0_15, %c0_16] : memref<1x160xf32, #tpu.memory_space<vmem>>, vector<1x160xf32>
    %18 = vector.broadcast %17 : vector<1x160xf32> to vector<128x160xf32>
    %19 = arith.addf %16, %18 : vector<128x160xf32>
    %cst_17 = arith.constant 0.000000e+00 : f32
    %20 = vector.broadcast %cst_17 : f32 to vector<128x160xf32>
    %21 = arith.maximumf %19, %20 : vector<128x160xf32>
    %c0_18 = arith.constant 0 : index
    %c0_19 = arith.constant 0 : index
    %22 = vector.load %arg9[%c0_18, %c0_19] : memref<128x160xf32, #tpu.memory_space<vmem>>, vector<128x160xf32>
    tpu.vector_store %arg9[%c0_18, %c0_19], %21 {strides = array<i32>} : memref<128x160xf32, #tpu.memory_space<vmem>>, vector<128x160xf32>,
    return
  }
  func.func @transform_0(%arg0: i32) -> (i32, i32) {
    %c0_i32 = arith.constant 0 : i32
    %c0_i32_0 = arith.constant 0 : i32
    return %arg0, %c0_i32 : i32, i32
  }
  func.func @transform_1(%arg0: i32) -> (i32, i32) {
    %c0_i32 = arith.constant 0 : i32
    %c0_i32_0 = arith.constant 0 : i32
    %c0_i32_1 = arith.constant 0 : i32
    return %c0_i32, %c0_i32_0 : i32, i32
  }
  func.func @transform_2(%arg0: i32) -> (i32, i32) {
    %c0_i32 = arith.constant 0 : i32
    %c0_i32_0 = arith.constant 0 : i32
    %c0_i32_1 = arith.constant 0 : i32
    return %c0_i32, %c0_i32_0 : i32, i32
  }
  func.func @transform_3(%arg0: i32) -> (i32, i32) {
    %c0_i32 = arith.constant 0 : i32
    %c0_i32_0 = arith.constant 0 : i32
    %c0_i32_1 = arith.constant 0 : i32
    return %c0_i32, %c0_i32_0 : i32, i32
  }
  func.func @transform_4(%arg0: i32) -> (i32, i32) {
    %c0_i32 = arith.constant 0 : i32
    %c0_i32_0 = arith.constant 0 : i32
    %c0_i32_1 = arith.constant 0 : i32
    return %c0_i32, %c0_i32_0 : i32, i32
  }
  func.func @transform_5(%arg0: i32) -> (i32, i32) {
    %c0_i32 = arith.constant 0 : i32
    %c0_i32_0 = arith.constant 0 : i32
    %c0_i32_1 = arith.constant 0 : i32
    return %c0_i32, %c0_i32_0 : i32, i32
  }
  func.func @transform_6(%arg0: i32) -> (i32, i32) {
    %c0_i32 = arith.constant 0 : i32
    %c0_i32_0 = arith.constant 0 : i32
    %c0_i32_1 = arith.constant 0 : i32
    return %c0_i32, %c0_i32_0 : i32, i32
  }
  func.func @transform_7(%arg0: i32) -> (i32, i32) {
    %c0_i32 = arith.constant 0 : i32
    %c0_i32_0 = arith.constant 0 : i32
    return %arg0, %c0_i32 : i32, i32
  }
  func.func @transform_8(%arg0: i32) -> (i32, i32) {
    %c0_i32 = arith.constant 0 : i32
    %c0_i32_0 = arith.constant 0 : i32
    return %arg0, %c0_i32 : i32, i32
  }
}

</mosaic_0001>

<llo_original>
// kernel: tpu_custom_call.1
$region0: #{tpu_custom_call.1}
  #allocation0 [shape = 'u32[]', space=smem, size = 0x4, offset = 0x4, fixed_abs, tag = 'smem constant byte address 0x4 - core index']
  #allocation1 [shape = 'u32[144,128]{1,0:T(1,128)}', space=vmem, size = 0x12000, scoped, tag = 'internal scratch']
  %s0 = inlined_call_operand.vmem [shape: f32[128,27], index: 0, kind: input, shape index: {}]
  %s1 = inlined_call_operand.vmem [shape: f32[27,32], index: 1, kind: input, shape index: {}]
  %s2 = inlined_call_operand.vmem [shape: f32[1,32], index: 2, kind: input, shape index: {}]
  %s3 = inlined_call_operand.vmem [shape: f32[1,32], index: 3, kind: input, shape index: {}]
  %s4 = inlined_call_operand.vmem [shape: f32[32,160], index: 4, kind: input, shape index: {}]
  %s5 = inlined_call_operand.vmem [shape: f32[1,160], index: 5, kind: input, shape index: {}]
  %s6 = inlined_call_operand.vmem [shape: f32[1,160], index: 6, kind: input, shape index: {}]
  %s7 = inlined_call_operand.vmem [shape: f32[128,32], index: 7, kind: output, shape index: {0}]
  %s8 = inlined_call_operand.vmem [shape: f32[128,160], index: 8, kind: output, shape index: {1}]
  %9 = xla_tuple %s7, %s8
  %s10 = sld [smem:[#allocation0]]
  $region46: #{tpu_custom_call.1} parent=0
    _
  %s12 = ssub.s32 1, %s10
  %s13 = scalar_select 0, %s12, %s10
  // Predicated region
  $region2: #{tpu_custom_call.1} parent=0 // pred_check
    _
  $region3: #{tpu_custom_call.1} parent=0 // pred_check_branch
    %15 = sbr.rel (0) target = $region5
  $region4: #{tpu_custom_call.1} parent=0 // pred_region
    _
  $region5: #{tpu_custom_call.1} parent=0 // pred_fallthru
    _
  // Predicated region
  $region6: #{tpu_custom_call.1} parent=0 // pred_check
    _
  $region7: #{tpu_custom_call.1} parent=0 // pred_check_branch
    %17 = sbr.rel (0) target = $region9
  $region8: #{tpu_custom_call.1} parent=0 // pred_region
    _
  $region9: #{tpu_custom_call.1} parent=0 // pred_fallthru
    _
  // Predicated region
  $region10: #{tpu_custom_call.1} parent=0 // pred_check
    _
  $region11: #{tpu_custom_call.1} parent=0 // pred_check_branch
    %19 = sbr.rel (0) target = $region13
  $region12: #{tpu_custom_call.1} parent=0 // pred_region
    _
  $region13: #{tpu_custom_call.1} parent=0 // pred_fallthru
    _
  // Predicated region
  $region14: #{tpu_custom_call.1} parent=0 // pred_check
    _
  $region15: #{tpu_custom_call.1} parent=0 // pred_check_branch
    %21 = sbr.rel (0) target = $region17
  $region16: #{tpu_custom_call.1} parent=0 // pred_region
    _
  $region17: #{tpu_custom_call.1} parent=0 // pred_fallthru
    _
  // Predicated region
  $region18: #{tpu_custom_call.1} parent=0 // pred_check
    _
  $region19: #{tpu_custom_call.1} parent=0 // pred_check_branch
    %23 = sbr.rel (0) target = $region21
  $region20: #{tpu_custom_call.1} parent=0 // pred_region
    _
  $region21: #{tpu_custom_call.1} parent=0 // pred_fallthru
    _
  // Predicated region
  $region22: #{tpu_custom_call.1} parent=0 // pred_check
    _
  $region23: #{tpu_custom_call.1} parent=0 // pred_check_branch
    %25 = sbr.rel (0) target = $region25
  $region24: #{tpu_custom_call.1} parent=0 // pred_region
    _
  $region25: #{tpu_custom_call.1} parent=0 // pred_fallthru
    _
  // Predicated region
  $region26: #{tpu_custom_call.1} parent=0 // pred_check
    _
  $region27: #{tpu_custom_call.1} parent=0 // pred_check_branch
    %27 = sbr.rel (0) target = $region29
  $region28: #{tpu_custom_call.1} parent=0 // pred_region
    _
  $region29: #{tpu_custom_call.1} parent=0 // pred_fallthru
    _
  %v28 = vld [vmem:[%s0] sm:$0xff]
  %v29 = vld [vmem:[%s0 + $0x8] sm:$0xff]
  %v30 = vld [vmem:[%s0 + $0x10] sm:$0xff]
  %v31 = vld [vmem:[%s0 + $0x18] sm:$0xff]
  %v32 = vld [vmem:[%s0 + $0x20] sm:$0xff]
  %v33 = vld [vmem:[%s0 + $0x28] sm:$0xff]
  %v34 = vld [vmem:[%s0 + $0x30] sm:$0xff]
  %v35 = vld [vmem:[%s0 + $0x38] sm:$0xff]
  %v36 = vld [vmem:[%s0 + $0x40] sm:$0xff]
  %v37 = vld [vmem:[%s0 + $0x48] sm:$0xff]
  %v38 = vld [vmem:[%s0 + $0x50] sm:$0xff]
  %v39 = vld [vmem:[%s0 + $0x58] sm:$0xff]
  %v40 = vld [vmem:[%s0 + $0x60] sm:$0xff]
  %v41 = vld [vmem:[%s0 + $0x68] sm:$0xff]
  %v42 = vld [vmem:[%s0 + $0x70] sm:$0xff]
  %v43 = vld [vmem:[%s0 + $0x78] sm:$0xff]
  %v44 = vld [vmem:[%s1] sm:$0xff]
  %v45 = vld [vmem:[%s1 + $0x8] sm:$0xff]
  %v46 = vld [vmem:[%s1 + $0x10] sm:$0xff]
  %v47 = vld [vmem:[%s1 + $0x18] sm:$0x7]
  %vm48 = vcmask 220160
  %v50 = vsel %vm48, %v28, 0
  %v53 = vsel %vm48, %v29, 0
  %v56 = vsel %vm48, %v30, 0
  %v59 = vsel %vm48, %v31, 0
  %v62 = vsel %vm48, %v32, 0
  %v65 = vsel %vm48, %v33, 0
  %v68 = vsel %vm48, %v34, 0
  %v71 = vsel %vm48, %v35, 0
  %v74 = vsel %vm48, %v36, 0
  %v77 = vsel %vm48, %v37, 0
  %v80 = vsel %vm48, %v38, 0
  %v83 = vsel %vm48, %v39, 0
  %v86 = vsel %vm48, %v40, 0
  %v89 = vsel %vm48, %v41, 0
  %v92 = vsel %vm48, %v42, 0
  %v95 = vsel %vm48, %v43, 0
  %vm97 = vcmask 1042432
  %v99 = vsel %vm97, %v47, 0
  %101 = vmatprep.subr.mxu0 0.0
  %v102 = vand.u32 %v44, 4294901760
  %103 = vmatpush1.msra.mxu0 %v102
  %104 = vmatprep.subr.mxu0 0.0
  %v105 = vand.u32 %v45, 4294901760
  %106 = vmatpush1.msra.mxu0 %v105
  %107 = vmatprep.subr.mxu0 0.0
  %v108 = vand.u32 %v46, 4294901760
  %109 = vmatpush1.msra.mxu0 %v108
  %110 = vmatprep.subr.mxu0 0.0
  %v111 = vand.u32 %v99, 4294901760
  %112 = vmatpush1.msra.mxu0 %v111
  %113 = vmatprep.subr.mxu0 0.0
  %114 = vmatpush1.msra.mxu0 0.0
  %115 = vmatprep.subr.mxu0 0.0
  %116 = vmatpush1.msra.mxu0 0.0
  %117 = vmatprep.subr.mxu0 0.0
  %118 = vmatpush1.msra.mxu0 0.0
  %119 = vmatprep.subr.mxu0 0.0
  %120 = vmatpush1.msra.mxu0 0.0
  %121 = vmatprep.subr.mxu0 0.0
  %122 = vmatpush1.msra.mxu0 0.0
  %123 = vmatprep.subr.mxu0 0.0
  %124 = vmatpush1.msra.mxu0 0.0
  %125 = vmatprep.subr.mxu0 0.0
  %126 = vmatpush1.msra.mxu0 0.0
  %127 = vmatprep.subr.mxu0 0.0
  %128 = vmatpush1.msra.mxu0 0.0
  %129 = vmatprep.subr.mxu0 0.0
  %130 = vmatpush1.msra.mxu0 0.0
  %131 = vmatprep.subr.mxu0 0.0
  %132 = vmatpush1.msra.mxu0 0.0
  %133 = vmatprep.subr.mxu0 0.0
  %134 = vmatpush1.msra.mxu0 0.0
  %135 = vmatprep.subr.mxu0 0.0
  %136 = vmatpush1.msra.mxu0 0.0
  %137 = vmatprep.subr.mxu0 0.0
  %138 = vmatpush1.msra.mxu0 0.0
  %139 = vmatprep.subr.mxu0 0.0
  %140 = vmatpush1.msra.mxu0 0.0
  %141 = vmatprep.subr.mxu0 0.0
  %142 = vmatpush1.msra.mxu0 0.0
  %143 = vmatprep.subr.mxu0 0.0
  %144 = vmatpush1.msra.mxu0 0.0
  %145 = vmatprep.subr.mxu0 0.0
  %146 = vmatpush1.msra.mxu0 0.0
  %147 = vmatprep.subr.mxu0 0.0
  %148 = vmatpush1.msra.mxu0 0.0
  %149 = vmatprep.subr.mxu0 0.0
  %150 = vmatpush1.msra.mxu0 0.0
  %151 = vmatprep.subr.mxu0 0.0
  %152 = vmatpush1.msra.mxu0 0.0
  %153 = vmatprep.subr.mxu0 0.0
  %154 = vmatpush1.msra.mxu0 0.0
  %155 = vmatprep.subr.mxu0 0.0
  %156 = vmatpush1.msra.mxu0 0.0
  %157 = vmatprep.subr.mxu0 0.0
  %158 = vmatpush1.msra.mxu0 0.0
  %159 = vmatprep.subr.mxu0 0.0
  %160 = vmatpush1.msra.mxu0 0.0
  %161 = vmatprep.subr.mxu0 0.0
  %162 = vmatpush1.msra.mxu0 0.0
  %163 = vmatprep.subr.mxu0 0.0
  %164 = vmatpush1.msra.mxu0 0.0
  %165 = vmatprep.subr.mxu0 0.0
  %166 = vmatpush1.msra.mxu0 0.0
  %167 = vmatprep.subr.mxu0 0.0
  %168 = vmatpush1.msra.mxu0 0.0
  %169 = vmatprep.mubr.f32.mxu0 0.0
  %v170 = vand.u32 %v50, 4294901760
  %v171 = vsub.f32 %v50, %v170
  %v172 = vand.u32 %v171, 4294901760
  %v173 = vsub.f32 %v171, %v172
  %v174 = vand.u32 %v173, 4294901760
  %175 = vmatmul.mubr.f32.gmra.mrb[0].mxu0 %v174
  %v176 = vpop.f32.mrb[0].mxu0
  %v177 = vadd.f32 0.0, %v176
  %v178 = vpop.f32.mrb[0].mxu0
  %179 = vmatprep.mubr.f32.mxu0 0.0
  %v180 = vand.u32 %v53, 4294901760
  %v181 = vsub.f32 %v53, %v180
  %v182 = vand.u32 %v181, 4294901760
  %v183 = vsub.f32 %v181, %v182
  %v184 = vand.u32 %v183, 4294901760
  %185 = vmatmul.mubr.f32.gmra.mrb[0].mxu0 %v184
  %v186 = vpop.f32.mrb[0].mxu0
  %v187 = vadd.f32 0.0, %v186
  %v188 = vpop.f32.mrb[0].mxu0
  %189 = vmatprep.mubr.f32.mxu0 0.0
  %v190 = vand.u32 %v56, 4294901760
  %v191 = vsub.f32 %v56, %v190
  %v192 = vand.u32 %v191, 4294901760
  %v193 = vsub.f32 %v191, %v192
  %v194 = vand.u32 %v193, 4294901760
  %195 = vmatmul.mubr.f32.gmra.mrb[0].mxu0 %v194
  %v196 = vpop.f32.mrb[0].mxu0
  %v197 = vadd.f32 0.0, %v196
  %v198 = vpop.f32.mrb[0].mxu0
  %199 = vmatprep.mubr.f32.mxu0 0.0
  %v200 = vand.u32 %v59, 4294901760
  %v201 = vsub.f32 %v59, %v200
  %v202 = vand.u32 %v201, 4294901760
  %v203 = vsub.f32 %v201, %v202
  %v204 = vand.u32 %v203, 4294901760
  %205 = vmatmul.mubr.f32.gmra.mrb[0].mxu0 %v204
  %v206 = vpop.f32.mrb[0].mxu0
  %v207 = vadd.f32 0.0, %v206
  %v208 = vpop.f32.mrb[0].mxu0
  %209 = vmatprep.mubr.f32.mxu0 0.0
  %v210 = vand.u32 %v62, 4294901760
  %v211 = vsub.f32 %v62, %v210
  %v212 = vand.u32 %v211, 4294901760
  %v213 = vsub.f32 %v211, %v212
  %v214 = vand.u32 %v213, 4294901760
  %215 = vmatmul.mubr.f32.gmra.mrb[0].mxu0 %v214
  %v216 = vpop.f32.mrb[0].mxu0
  %v217 = vadd.f32 0.0, %v216
  %v218 = vpop.f32.mrb[0].mxu0
  %219 = vmatprep.mubr.f32.mxu0 0.0
  %v220 = vand.u32 %v65, 4294901760
  %v221 = vsub.f32 %v65, %v220
  %v222 = vand.u32 %v221, 4294901760
  %v223 = vsub.f32 %v221, %v222
  %v224 = vand.u32 %v223, 4294901760
  %225 = vmatmul.mubr.f32.gmra.mrb[0].mxu0 %v224
  %v226 = vpop.f32.mrb[0].mxu0
  %v227 = vadd.f32 0.0, %v226
  %v228 = vpop.f32.mrb[0].mxu0
  %229 = vmatprep.mubr.f32.mxu0 0.0
  %v230 = vand.u32 %v68, 4294901760
  %v231 = vsub.f32 %v68, %v230
  %v232 = vand.u32 %v231, 4294901760
  %v233 = vsub.f32 %v231, %v232
  %v234 = vand.u32 %v233, 4294901760
  %235 = vmatmul.mubr.f32.gmra.mrb[0].mxu0 %v234
  %v236 = vpop.f32.mrb[0].mxu0
  %v237 = vadd.f32 0.0, %v236
  %v238 = vpop.f32.mrb[0].mxu0
  %239 = vmatprep.mubr.f32.mxu0 0.0
  %v240 = vand.u32 %v71, 4294901760
  %v241 = vsub.f32 %v71, %v240
  %v242 = vand.u32 %v241, 4294901760
  %v243 = vsub.f32 %v241, %v242
  %v244 = vand.u32 %v243, 4294901760
  %245 = vmatmul.mubr.f32.gmra.mrb[0].mxu0 %v244
  %v246 = vpop.f32.mrb[0].mxu0
  %v247 = vadd.f32 0.0, %v246
  %v248 = vpop.f32.mrb[0].mxu0
  %249 = vmatprep.mubr.f32.mxu0 0.0
  %v250 = vand.u32 %v74, 4294901760
  %v251 = vsub.f32 %v74, %v250
  %v252 = vand.u32 %v251, 4294901760
  %v253 = vsub.f32 %v251, %v252
  %v254 = vand.u32 %v253, 4294901760
  %255 = vmatmul.mubr.f32.gmra.mrb[0].mxu0 %v254
  %v256 = vpop.f32.mrb[0].mxu0
  %v257 = vadd.f32 0.0, %v256
  %v258 = vpop.f32.mrb[0].mxu0
  %259 = vmatprep.mubr.f32.mxu0 0.0
  %v260 = vand.u32 %v77, 4294901760
  %v261 = vsub.f32 %v77, %v260
  %v262 = vand.u32 %v261, 4294901760
  %v263 = vsub.f32 %v261, %v262
  %v264 = vand.u32 %v263, 4294901760
  %265 = vmatmul.mubr.f32.gmra.mrb[0].mxu0 %v264
  %v266 = vpop.f32.mrb[0].mxu0
  %v267 = vadd.f32 0.0, %v266
  %v268 = vpop.f32.mrb[0].mxu0
  %269 = vmatprep.mubr.f32.mxu0 0.0
  %v270 = vand.u32 %v80, 4294901760
  %v271 = vsub.f32 %v80, %v270
  %v272 = vand.u32 %v271, 4294901760
  %v273 = vsub.f32 %v271, %v272
  %v274 = vand.u32 %v273, 4294901760
  %275 = vmatmul.mubr.f32.gmra.mrb[0].mxu0 %v274
  %v276 = vpop.f32.mrb[0].mxu0
  %v277 = vadd.f32 0.0, %v276
  %v278 = vpop.f32.mrb[0].mxu0
  %279 = vmatprep.mubr.f32.mxu0 0.0
  %v280 = vand.u32 %v83, 4294901760
  %v281 = vsub.f32 %v83, %v280
  %v282 = vand.u32 %v281, 4294901760
  %v283 = vsub.f32 %v281, %v282
  %v284 = vand.u32 %v283, 4294901760
  %285 = vmatmul.mubr.f32.gmra.mrb[0].mxu0 %v284
  %v286 = vpop.f32.mrb[0].mxu0
  %v287 = vadd.f32 0.0, %v286
  %v288 = vpop.f32.mrb[0].mxu0
  %289 = vmatprep.mubr.f32.mxu0 0.0
  %v290 = vand.u32 %v86, 4294901760
  %v291 = vsub.f32 %v86, %v290
  %v292 = vand.u32 %v291, 4294901760
  %v293 = vsub.f32 %v291, %v292
  %v294 = vand.u32 %v293, 4294901760
  %295 = vmatmul.mubr.f32.gmra.mrb[0].mxu0 %v294
  %v296 = vpop.f32.mrb[0].mxu0
  %v297 = vadd.f32 0.0, %v296
  %v298 = vpop.f32.mrb[0].mxu0
  %299 = vmatprep.mubr.f32.mxu0 0.0
  %v300 = vand.u32 %v89, 4294901760
  %v301 = vsub.f32 %v89, %v300
  %v302 = vand.u32 %v301, 4294901760
  %v303 = vsub.f32 %v301, %v302
  %v304 = vand.u32 %v303, 4294901760
  %305 = vmatmul.mubr.f32.gmra.mrb[0].mxu0 %v304
  %v306 = vpop.f32.mrb[0].mxu0
  %v307 = vadd.f32 0.0, %v306
  %v308 = vpop.f32.mrb[0].mxu0
  %309 = vmatprep.mubr.f32.mxu0 0.0
  %v310 = vand.u32 %v92, 4294901760
  %v311 = vsub.f32 %v92, %v310
  %v312 = vand.u32 %v311, 4294901760
  %v313 = vsub.f32 %v311, %v312
  %v314 = vand.u32 %v313, 4294901760
  %315 = vmatmul.mubr.f32.gmra.mrb[0].mxu0 %v314
  %v316 = vpop.f32.mrb[0].mxu0
  %v317 = vadd.f32 0.0, %v316
  %v318 = vpop.f32.mrb[0].mxu0
  %319 = vmatprep.mubr.f32.mxu0 0.0
  %v320 = vand.u32 %v95, 4294901760
  %v321 = vsub.f32 %v95, %v320
  %v322 = vand.u32 %v321, 4294901760
  %v323 = vsub.f32 %v321, %v322
  %v324 = vand.u32 %v323, 4294901760
  %325 = vmatmul.mubr.f32.gmra.mrb[0].mxu0 %v324
  %v326 = vpop.f32.mrb[0].mxu0
  %v327 = vadd.f32 0.0, %v326
  %v328 = vpop.f32.mrb[0].mxu0
  %329 = vdwg.mxu0
  %330 = vmatprep.subr.mxu0 0.0
  %v331 = vand.u32 %v44, 4294901760
  %v332 = vsub.f32 %v44, %v331
  %v333 = vand.u32 %v332, 4294901760
  %v334 = vsub.f32 %v332, %v333
  %v335 = vand.u32 %v334, 4294901760
  %336 = vmatpush1.msra.mxu0 %v335
  %337 = vmatprep.subr.mxu0 0.0
  %v338 = vand.u32 %v45, 4294901760
  %v339 = vsub.f32 %v45, %v338
  %v340 = vand.u32 %v339, 4294901760
  %v341 = vsub.f32 %v339, %v340
  %v342 = vand.u32 %v341, 4294901760
  %343 = vmatpush1.msra.mxu0 %v342
  %344 = vmatprep.subr.mxu0 0.0
  %v345 = vand.u32 %v46, 4294901760
  %v346 = vsub.f32 %v46, %v345
  %v347 = vand.u32 %v346, 4294901760
  %v348 = vsub.f32 %v346, %v347
  %v349 = vand.u32 %v348, 4294901760
  %350 = vmatpush1.msra.mxu0 %v349
  %351 = vmatprep.subr.mxu0 0.0
  %v352 = vand.u32 %v99, 4294901760
  %v353 = vsub.f32 %v99, %v352
  %v354 = vand.u32 %v353, 4294901760
  %v355 = vsub.f32 %v353, %v354
  %v356 = vand.u32 %v355, 4294901760
  %357 = vmatpush1.msra.mxu0 %v356
  %358 = vmatprep.subr.mxu0 0.0
  %359 = vmatpush1.msra.mxu0 0.0
  %360 = vmatprep.subr.mxu0 0.0
  %361 = vmatpush1.msra.mxu0 0.0
  %362 = vmatprep.subr.mxu0 0.0
  %363 = vmatpush1.msra.mxu0 0.0
  %364 = vmatprep.subr.mxu0 0.0
  %365 = vmatpush1.msra.mxu0 0.0
  %366 = vmatprep.subr.mxu0 0.0
  %367 = vmatpush1.msra.mxu0 0.0
  %368 = vmatprep.subr.mxu0 0.0
  %369 = vmatpush1.msra.mxu0 0.0
  %370 = vmatprep.subr.mxu0 0.0
  %371 = vmatpush1.msra.mxu0 0.0
  %372 = vmatprep.subr.mxu0 0.0
  %373 = vmatpush1.msra.mxu0 0.0
  %374 = vmatprep.subr.mxu0 0.0
  %375 = vmatpush1.msra.mxu0 0.0
  %376 = vmatprep.subr.mxu0 0.0
  %377 = vmatpush1.msra.mxu0 0.0
  %378 = vmatprep.subr.mxu0 0.0
  %379 = vmatpush1.msra.mxu0 0.0
  %380 = vmatprep.subr.mxu0 0.0
  %381 = vmatpush1.msra.mxu0 0.0
  %382 = vmatprep.subr.mxu0 0.0
  %383 = vmatpush1.msra.mxu0 0.0
  %384 = vmatprep.subr.mxu0 0.0
  %385 = vmatpush1.msra.mxu0 0.0
  %386 = vmatprep.subr.mxu0 0.0
  %387 = vmatpush1.msra.mxu0 0.0
  %388 = vmatprep.subr.mxu0 0.0
  %389 = vmatpush1.msra.mxu0 0.0
  %390 = vmatprep.subr.mxu0 0.0
  %391 = vmatpush1.msra.mxu0 0.0
  %392 = vmatprep.subr.mxu0 0.0
  %393 = vmatpush1.msra.mxu0 0.0
  %394 = vmatprep.subr.mxu0 0.0
  %395 = vmatpush1.msra.mxu0 0.0
  %396 = vmatprep.subr.mxu0 0.0
  %397 = vmatpush1.msra.mxu0 0.0
  %398 = vmatprep.subr.mxu0 0.0
  %399 = vmatpush1.msra.mxu0 0.0
  %400 = vmatprep.subr.mxu0 0.0
  %401 = vmatpush1.msra.mxu0 0.0
  %402 = vmatprep.subr.mxu0 0.0
  %403 = vmatpush1.msra.mxu0 0.0
  %404 = vmatprep.subr.mxu0 0.0
  %405 = vmatpush1.msra.mxu0 0.0
  %406 = vmatprep.subr.mxu0 0.0
  %407 = vmatpush1.msra.mxu0 0.0
  %408 = vmatprep.subr.mxu0 0.0
  %409 = vmatpush1.msra.mxu0 0.0
  %410 = vmatprep.subr.mxu0 0.0
  %411 = vmatpush1.msra.mxu0 0.0
  %412 = vmatprep.subr.mxu0 0.0
  %413 = vmatpush1.msra.mxu0 0.0
  %414 = vmatprep.mubr.f32.mxu0 0.0
  %v415 = vand.u32 %v50, 4294901760
  %416 = vmatmul.mubr.f32.gmra.mrb[0].mxu0 %v415
  %v417 = vpop.f32.mrb[0].mxu0
  %v418 = vadd.f32 %v177, %v417
  %v419 = vpop.f32.mrb[0].mxu0
  %420 = vmatprep.mubr.f32.mxu0 0.0
  %v421 = vand.u32 %v53, 4294901760
  %422 = vmatmul.mubr.f32.gmra.mrb[0].mxu0 %v421
  %v423 = vpop.f32.mrb[0].mxu0
  %v424 = vadd.f32 %v187, %v423
  %v425 = vpop.f32.mrb[0].mxu0
  %426 = vmatprep.mubr.f32.mxu0 0.0
  %v427 = vand.u32 %v56, 4294901760
  %428 = vmatmul.mubr.f32.gmra.mrb[0].mxu0 %v427
  %v429 = vpop.f32.mrb[0].mxu0
  %v430 = vadd.f32 %v197, %v429
  %v431 = vpop.f32.mrb[0].mxu0
  %432 = vmatprep.mubr.f32.mxu0 0.0
  %v433 = vand.u32 %v59, 4294901760
  %434 = vmatmul.mubr.f32.gmra.mrb[0].mxu0 %v433
  %v435 = vpop.f32.mrb[0].mxu0
  %v436 = vadd.f32 %v207, %v435
  %v437 = vpop.f32.mrb[0].mxu0
  %438 = vmatprep.mubr.f32.mxu0 0.0
  %v439 = vand.u32 %v62, 4294901760
  %440 = vmatmul.mubr.f32.gmra.mrb[0].mxu0 %v439
  %v441 = vpop.f32.mrb[0].mxu0
  %v442 = vadd.f32 %v217, %v441
  %v443 = vpop.f32.mrb[0].mxu0
  %444 = vmatprep.mubr.f32.mxu0 0.0
  %v445 = vand.u32 %v65, 4294901760
  %446 = vmatmul.mubr.f32.gmra.mrb[0].mxu0 %v445
  %v447 = vpop.f32.mrb[0].mxu0
  %v448 = vadd.f32 %v227, %v447
  %v449 = vpop.f32.mrb[0].mxu0
  %450 = vmatprep.mubr.f32.mxu0 0.0
  %v451 = vand.u32 %v68, 4294901760
  %452 = vmatmul.mubr.f32.gmra.mrb[0].mxu0 %v451
  %v453 = vpop.f32.mrb[0].mxu0
  %v454 = vadd.f32 %v237, %v453
  %v455 = vpop.f32.mrb[0].mxu0
  %456 = vmatprep.mubr.f32.mxu0 0.0
  %v457 = vand.u32 %v71, 4294901760
  %458 = vmatmul.mubr.f32.gmra.mrb[0].mxu0 %v457
  %v459 = vpop.f32.mrb[0].mxu0
  %v460 = vadd.f32 %v247, %v459
  %v461 = vpop.f32.mrb[0].mxu0
  %462 = vmatprep.mubr.f32.mxu0 0.0
  %v463 = vand.u32 %v74, 4294901760
  %464 = vmatmul.mubr.f32.gmra.mrb[0].mxu0 %v463
  %v465 = vpop.f32.mrb[0].mxu0
  %v466 = vadd.f32 %v257, %v465
  %v467 = vpop.f32.mrb[0].mxu0
  %468 = vmatprep.mubr.f32.mxu0 0.0
  %v469 = vand.u32 %v77, 4294901760
  %470 = vmatmul.mubr.f32.gmra.mrb[0].mxu0 %v469
  %v471 = vpop.f32.mrb[0].mxu0
  %v472 = vadd.f32 %v267, %v471
  %v473 = vpop.f32.mrb[0].mxu0
  %474 = vmatprep.mubr.f32.mxu0 0.0
  %v475 = vand.u32 %v80, 4294901760
  %476 = vmatmul.mubr.f32.gmra.mrb[0].mxu0 %v475
  %v477 = vpop.f32.mrb[0].mxu0
  %v478 = vadd.f32 %v277, %v477
  %v479 = vpop.f32.mrb[0].mxu0
  %480 = vmatprep.mubr.f32.mxu0 0.0
  %v481 = vand.u32 %v83, 4294901760
  %482 = vmatmul.mubr.f32.gmra.mrb[0].mxu0 %v481
  %v483 = vpop.f32.mrb[0].mxu0
  %v484 = vadd.f32 %v287, %v483
  %v485 = vpop.f32.mrb[0].mxu0
  %486 = vmatprep.mubr.f32.mxu0 0.0
  %v487 = vand.u32 %v86, 4294901760
  %488 = vmatmul.mubr.f32.gmra.mrb[0].mxu0 %v487
  %v489 = vpop.f32.mrb[0].mxu0
  %v490 = vadd.f32 %v297, %v489
  %v491 = vpop.f32.mrb[0].mxu0
  %492 = vmatprep.mubr.f32.mxu0 0.0
  %v493 = vand.u32 %v89, 4294901760
  %494 = vmatmul.mubr.f32.gmra.mrb[0].mxu0 %v493
  %v495 = vpop.f32.mrb[0].mxu0
  %v496 = vadd.f32 %v307, %v495
  %v497 = vpop.f32.mrb[0].mxu0
  %498 = vmatprep.mubr.f32.mxu0 0.0
  %v499 = vand.u32 %v92, 4294901760
  %500 = vmatmul.mubr.f32.gmra.mrb[0].mxu0 %v499
  %v501 = vpop.f32.mrb[0].mxu0
  %v502 = vadd.f32 %v317, %v501
  %v503 = vpop.f32.mrb[0].mxu0
  %504 = vmatprep.mubr.f32.mxu0 0.0
  %v505 = vand.u32 %v95, 4294901760
  %506 = vmatmul.mubr.f32.gmra.mrb[0].mxu0 %v505
  %v507 = vpop.f32.mrb[0].mxu0
  %v508 = vadd.f32 %v327, %v507
  %v509 = vpop.f32.mrb[0].mxu0
  %510 = vdwg.mxu0
  %511 = vmatprep.subr.mxu0 0.0
  %v512 = vand.u32 %v44, 4294901760
  %v513 = vsub.f32 %v44, %v512
  %514 = vmatpush1.msra.mxu0 %v513
  %515 = vmatprep.subr.mxu0 0.0
  %v516 = vand.u32 %v45, 4294901760
  %v517 = vsub.f32 %v45, %v516
  %518 = vmatpush1.msra.mxu0 %v517
  %519 = vmatprep.subr.mxu0 0.0
  %v520 = vand.u32 %v46, 4294901760
  %v521 = vsub.f32 %v46, %v520
  %522 = vmatpush1.msra.mxu0 %v521
  %523 = vmatprep.subr.mxu0 0.0
  %v524 = vand.u32 %v99, 4294901760
  %v525 = vsub.f32 %v99, %v524
  %526 = vmatpush1.msra.mxu0 %v525
  %527 = vmatprep.subr.mxu0 0.0
  %528 = vmatpush1.msra.mxu0 0.0
  %529 = vmatprep.subr.mxu0 0.0
  %530 = vmatpush1.msra.mxu0 0.0
  %531 = vmatprep.subr.mxu0 0.0
  %532 = vmatpush1.msra.mxu0 0.0
  %533 = vmatprep.subr.mxu0 0.0
  %534 = vmatpush1.msra.mxu0 0.0
  %535 = vmatprep.subr.mxu0 0.0
  %536 = vmatpush1.msra.mxu0 0.0
  %537 = vmatprep.subr.mxu0 0.0
  %538 = vmatpush1.msra.mxu0 0.0
  %539 = vmatprep.subr.mxu0 0.0
  %540 = vmatpush1.msra.mxu0 0.0
  %541 = vmatprep.subr.mxu0 0.0
  %542 = vmatpush1.msra.mxu0 0.0
  %543 = vmatprep.subr.mxu0 0.0
  %544 = vmatpush1.msra.mxu0 0.0
  %545 = vmatprep.subr.mxu0 0.0
  %546 = vmatpush1.msra.mxu0 0.0
  %547 = vmatprep.subr.mxu0 0.0
  %548 = vmatpush1.msra.mxu0 0.0
  %549 = vmatprep.subr.mxu0 0.0
  %550 = vmatpush1.msra.mxu0 0.0
  %551 = vmatprep.subr.mxu0 0.0
  %552 = vmatpush1.msra.mxu0 0.0
  %553 = vmatprep.subr.mxu0 0.0
  %554 = vmatpush1.msra.mxu0 0.0
  %555 = vmatprep.subr.mxu0 0.0
  %556 = vmatpush1.msra.mxu0 0.0
  %557 = vmatprep.subr.mxu0 0.0
  %558 = vmatpush1.msra.mxu0 0.0
  %559 = vmatprep.subr.mxu0 0.0
  %560 = vmatpush1.msra.mxu0 0.0
  %561 = vmatprep.subr.mxu0 0.0
  %562 = vmatpush1.msra.mxu0 0.0
  %563 = vmatprep.subr.mxu0 0.0
  %564 = vmatpush1.msra.mxu0 0.0
  %565 = vmatprep.subr.mxu0 0.0
  %566 = vmatpush1.msra.mxu0 0.0
  %567 = vmatprep.subr.mxu0 0.0
  %568 = vmatpush1.msra.mxu0 0.0
  %569 = vmatprep.subr.mxu0 0.0
  %570 = vmatpush1.msra.mxu0 0.0
  %571 = vmatprep.subr.mxu0 0.0
  %572 = vmatpush1.msra.mxu0 0.0
  %573 = vmatprep.subr.mxu0 0.0
  %574 = vmatpush1.msra.mxu0 0.0
  %575 = vmatprep.subr.mxu0 0.0
  %576 = vmatpush1.msra.mxu0 0.0
  %577 = vmatprep.subr.mxu0 0.0
  %578 = vmatpush1.msra.mxu0 0.0
  %579 = vmatprep.subr.mxu0 0.0
  %580 = vmatpush1.msra.mxu0 0.0
  %581 = vmatprep.subr.mxu0 0.0
  %582 = vmatpush1.msra.mxu0 0.0
  %583 = vmatprep.mubr.f32.mxu0 0.0
  %v584 = vand.u32 %v50, 4294901760
  %v585 = vsub.f32 %v50, %v584
  %586 = vmatmul.mubr.f32.gmra.mrb[0].mxu0 %v585
  %v587 = vpop.f32.mrb[0].mxu0
  %v588 = vadd.f32 %v418, %v587
  %v589 = vpop.f32.mrb[0].mxu0
  %590 = vmatprep.mubr.f32.mxu0 0.0
  %v591 = vand.u32 %v53, 4294901760
  %v592 = vsub.f32 %v53, %v591
  %593 = vmatmul.mubr.f32.gmra.mrb[0].mxu0 %v592
  %v594 = vpop.f32.mrb[0].mxu0
  %v595 = vadd.f32 %v424, %v594
  %v596 = vpop.f32.mrb[0].mxu0
  %597 = vmatprep.mubr.f32.mxu0 0.0
  %v598 = vand.u32 %v56, 4294901760
  %v599 = vsub.f32 %v56, %v598
  %600 = vmatmul.mubr.f32.gmra.mrb[0].mxu0 %v599
  %v601 = vpop.f32.mrb[0].mxu0
  %v602 = vadd.f32 %v430, %v601
  %v603 = vpop.f32.mrb[0].mxu0
  %604 = vmatprep.mubr.f32.mxu0 0.0
  %v605 = vand.u32 %v59, 4294901760
  %v606 = vsub.f32 %v59, %v605
  %607 = vmatmul.mubr.f32.gmra.mrb[0].mxu0 %v606
  %v608 = vpop.f32.mrb[0].mxu0
  %v609 = vadd.f32 %v436, %v608
  %v610 = vpop.f32.mrb[0].mxu0
  %611 = vmatprep.mubr.f32.mxu0 0.0
  %v612 = vand.u32 %v62, 4294901760
  %v613 = vsub.f32 %v62, %v612
  %614 = vmatmul.mubr.f32.gmra.mrb[0].mxu0 %v613
  %v615 = vpop.f32.mrb[0].mxu0
  %v616 = vadd.f32 %v442, %v615
  %v617 = vpop.f32.mrb[0].mxu0
  %618 = vmatprep.mubr.f32.mxu0 0.0
  %v619 = vand.u32 %v65, 4294901760
  %v620 = vsub.f32 %v65, %v619
  %621 = vmatmul.mubr.f32.gmra.mrb[0].mxu0 %v620
  %v622 = vpop.f32.mrb[0].mxu0
  %v623 = vadd.f32 %v448, %v622
  %v624 = vpop.f32.mrb[0].mxu0
  %625 = vmatprep.mubr.f32.mxu0 0.0
  %v626 = vand.u32 %v68, 4294901760
  %v627 = vsub.f32 %v68, %v626
  %628 = vmatmul.mubr.f32.gmra.mrb[0].mxu0 %v627
  %v629 = vpop.f32.mrb[0].mxu0
  %v630 = vadd.f32 %v454, %v629
  %v631 = vpop.f32.mrb[0].mxu0
  %632 = vmatprep.mubr.f32.mxu0 0.0
  %v633 = vand.u32 %v71, 4294901760
  %v634 = vsub.f32 %v71, %v633
  %635 = vmatmul.mubr.f32.gmra.mrb[0].mxu0 %v634
  %v636 = vpop.f32.mrb[0].mxu0
  %v637 = vadd.f32 %v460, %v636
  %v638 = vpop.f32.mrb[0].mxu0
  %639 = vmatprep.mubr.f32.mxu0 0.0
  %v640 = vand.u32 %v74, 4294901760
  %v641 = vsub.f32 %v74, %v640
  %642 = vmatmul.mubr.f32.gmra.mrb[0].mxu0 %v641
  %v643 = vpop.f32.mrb[0].mxu0
  %v644 = vadd.f32 %v466, %v643
  %v645 = vpop.f32.mrb[0].mxu0
  %646 = vmatprep.mubr.f32.mxu0 0.0
  %v647 = vand.u32 %v77, 4294901760
  %v648 = vsub.f32 %v77, %v647
  %649 = vmatmul.mubr.f32.gmra.mrb[0].mxu0 %v648
  %v650 = vpop.f32.mrb[0].mxu0
  %v651 = vadd.f32 %v472, %v650
  %v652 = vpop.f32.mrb[0].mxu0
  %653 = vmatprep.mubr.f32.mxu0 0.0
  %v654 = vand.u32 %v80, 4294901760
  %v655 = vsub.f32 %v80, %v654
  %656 = vmatmul.mubr.f32.gmra.mrb[0].mxu0 %v655
  %v657 = vpop.f32.mrb[0].mxu0
  %v658 = vadd.f32 %v478, %v657
  %v659 = vpop.f32.mrb[0].mxu0
  %660 = vmatprep.mubr.f32.mxu0 0.0
  %v661 = vand.u32 %v83, 4294901760
  %v662 = vsub.f32 %v83, %v661
  %663 = vmatmul.mubr.f32.gmra.mrb[0].mxu0 %v662
  %v664 = vpop.f32.mrb[0].mxu0
  %v665 = vadd.f32 %v484, %v664
  %v666 = vpop.f32.mrb[0].mxu0
  %667 = vmatprep.mubr.f32.mxu0 0.0
  %v668 = vand.u32 %v86, 4294901760
  %v669 = vsub.f32 %v86, %v668
  %670 = vmatmul.mubr.f32.gmra.mrb[0].mxu0 %v669
  %v671 = vpop.f32.mrb[0].mxu0
  %v672 = vadd.f32 %v490, %v671
  %v673 = vpop.f32.mrb[0].mxu0
  %674 = vmatprep.mubr.f32.mxu0 0.0
  %v675 = vand.u32 %v89, 4294901760
  %v676 = vsub.f32 %v89, %v675
  %677 = vmatmul.mubr.f32.gmra.mrb[0].mxu0 %v676
  %v678 = vpop.f32.mrb[0].mxu0
  %v679 = vadd.f32 %v496, %v678
  %v680 = vpop.f32.mrb[0].mxu0
  %681 = vmatprep.mubr.f32.mxu0 0.0
  %v682 = vand.u32 %v92, 4294901760
  %v683 = vsub.f32 %v92, %v682
  %684 = vmatmul.mubr.f32.gmra.mrb[0].mxu0 %v683
  %v685 = vpop.f32.mrb[0].mxu0
  %v686 = vadd.f32 %v502, %v685
  %v687 = vpop.f32.mrb[0].mxu0
  %688 = vmatprep.mubr.f32.mxu0 0.0
  %v689 = vand.u32 %v95, 4294901760
  %v690 = vsub.f32 %v95, %v689
  %691 = vmatmul.mubr.f32.gmra.mrb[0].mxu0 %v690
  %v692 = vpop.f32.mrb[0].mxu0
  %v693 = vadd.f32 %v508, %v692
  %v694 = vpop.f32.mrb[0].mxu0
  %695 = vdwg.mxu0
  %696 = vmatprep.subr.mxu0 0.0
  %v697 = vand.u32 %v44, 4294901760
  %698 = vmatpush1.msra.mxu0 %v697
  %699 = vmatprep.subr.mxu0 0.0
  %v700 = vand.u32 %v45, 4294901760
  %701 = vmatpush1.msra.mxu0 %v700
  %702 = vmatprep.subr.mxu0 0.0
  %v703 = vand.u32 %v46, 4294901760
  %704 = vmatpush1.msra.mxu0 %v703
  %705 = vmatprep.subr.mxu0 0.0
  %v706 = vand.u32 %v99, 4294901760
  %707 = vmatpush1.msra.mxu0 %v706
  %708 = vmatprep.subr.mxu0 0.0
  %709 = vmatpush1.msra.mxu0 0.0
  %710 = vmatprep.subr.mxu0 0.0
  %711 = vmatpush1.msra.mxu0 0.0
  %712 = vmatprep.subr.mxu0 0.0
  %713 = vmatpush1.msra.mxu0 0.0
  %714 = vmatprep.subr.mxu0 0.0
  %715 = vmatpush1.msra.mxu0 0.0
  %716 = vmatprep.subr.mxu0 0.0
  %717 = vmatpush1.msra.mxu0 0.0
  %718 = vmatprep.subr.mxu0 0.0
  %719 = vmatpush1.msra.mxu0 0.0
  %720 = vmatprep.subr.mxu0 0.0
  %721 = vmatpush1.msra.mxu0 0.0
  %722 = vmatprep.subr.mxu0 0.0
  %723 = vmatpush1.msra.mxu0 0.0
  %724 = vmatprep.subr.mxu0 0.0
  %725 = vmatpush1.msra.mxu0 0.0
  %726 = vmatprep.subr.mxu0 0.0
  %727 = vmatpush1.msra.mxu0 0.0
  %728 = vmatprep.subr.mxu0 0.0
  %729 = vmatpush1.msra.mxu0 0.0
  %730 = vmatprep.subr.mxu0 0.0
  %731 = vmatpush1.msra.mxu0 0.0
  %732 = vmatprep.subr.mxu0 0.0
  %733 = vmatpush1.msra.mxu0 0.0
  %734 = vmatprep.subr.mxu0 0.0
  %735 = vmatpush1.msra.mxu0 0.0
  %736 = vmatprep.subr.mxu0 0.0
  %737 = vmatpush1.msra.mxu0 0.0
  %738 = vmatprep.subr.mxu0 0.0
  %739 = vmatpush1.msra.mxu0 0.0
  %740 = vmatprep.subr.mxu0 0.0
  %741 = vmatpush1.msra.mxu0 0.0
  %742 = vmatprep.subr.mxu0 0.0
  %743 = vmatpush1.msra.mxu0 0.0
  %744 = vmatprep.subr.mxu0 0.0
  %745 = vmatpush1.msra.mxu0 0.0
  %746 = vmatprep.subr.mxu0 0.0
  %747 = vmatpush1.msra.mxu0 0.0
  %748 = vmatprep.subr.mxu0 0.0
  %749 = vmatpush1.msra.mxu0 0.0
  %750 = vmatprep.subr.mxu0 0.0
  %751 = vmatpush1.msra.mxu0 0.0
  %752 = vmatprep.subr.mxu0 0.0
  %753 = vmatpush1.msra.mxu0 0.0
  %754 = vmatprep.subr.mxu0 0.0
  %755 = vmatpush1.msra.mxu0 0.0
  %756 = vmatprep.subr.mxu0 0.0
  %757 = vmatpush1.msra.mxu0 0.0
  %758 = vmatprep.subr.mxu0 0.0
  %759 = vmatpush1.msra.mxu0 0.0
  %760 = vmatprep.subr.mxu0 0.0
  %761 = vmatpush1.msra.mxu0 0.0
  %762 = vmatprep.subr.mxu0 0.0
  %763 = vmatpush1.msra.mxu0 0.0
  %764 = vmatprep.mubr.f32.mxu0 0.0
  %v765 = vand.u32 %v50, 4294901760
  %v766 = vsub.f32 %v50, %v765
  %v767 = vand.u32 %v766, 4294901760
  %768 = vmatmul.mubr.f32.gmra.mrb[0].mxu0 %v767
  %v769 = vpop.f32.mrb[0].mxu0
  %v770 = vadd.f32 %v588, %v769
  %v771 = vpop.f32.mrb[0].mxu0
  %772 = vmatprep.mubr.f32.mxu0 0.0
  %v773 = vand.u32 %v53, 4294901760
  %v774 = vsub.f32 %v53, %v773
  %v775 = vand.u32 %v774, 4294901760
  %776 = vmatmul.mubr.f32.gmra.mrb[0].mxu0 %v775
  %v777 = vpop.f32.mrb[0].mxu0
  %v778 = vadd.f32 %v595, %v777
  %v779 = vpop.f32.mrb[0].mxu0
  %780 = vmatprep.mubr.f32.mxu0 0.0
  %v781 = vand.u32 %v56, 4294901760
  %v782 = vsub.f32 %v56, %v781
  %v783 = vand.u32 %v782, 4294901760
  %784 = vmatmul.mubr.f32.gmra.mrb[0].mxu0 %v783
  %v785 = vpop.f32.mrb[0].mxu0
  %v786 = vadd.f32 %v602, %v785
  %v787 = vpop.f32.mrb[0].mxu0
  %788 = vmatprep.mubr.f32.mxu0 0.0
  %v789 = vand.u32 %v59, 4294901760
  %v790 = vsub.f32 %v59, %v789
  %v791 = vand.u32 %v790, 4294901760
  %792 = vmatmul.mubr.f32.gmra.mrb[0].mxu0 %v791
  %v793 = vpop.f32.mrb[0].mxu0
  %v794 = vadd.f32 %v609, %v793
  %v795 = vpop.f32.mrb[0].mxu0
  %796 = vmatprep.mubr.f32.mxu0 0.0
  %v797 = vand.u32 %v62, 4294901760
  %v798 = vsub.f32 %v62, %v797
  %v799 = vand.u32 %v798, 4294901760
  %800 = vmatmul.mubr.f32.gmra.mrb[0].mxu0 %v799
  %v801 = vpop.f32.mrb[0].mxu0
  %v802 = vadd.f32 %v616, %v801
  %v803 = vpop.f32.mrb[0].mxu0
  %804 = vmatprep.mubr.f32.mxu0 0.0
  %v805 = vand.u32 %v65, 4294901760
  %v806 = vsub.f32 %v65, %v805
  %v807 = vand.u32 %v806, 4294901760
  %808 = vmatmul.mubr.f32.gmra.mrb[0].mxu0 %v807
  %v809 = vpop.f32.mrb[0].mxu0
  %v810 = vadd.f32 %v623, %v809
  %v811 = vpop.f32.mrb[0].mxu0
  %812 = vmatprep.mubr.f32.mxu0 0.0
  %v813 = vand.u32 %v68, 4294901760
  %v814 = vsub.f32 %v68, %v813
  %v815 = vand.u32 %v814, 4294901760
  %816 = vmatmul.mubr.f32.gmra.mrb[0].mxu0 %v815
  %v817 = vpop.f32.mrb[0].mxu0
  %v818 = vadd.f32 %v630, %v817
  %v819 = vpop.f32.mrb[0].mxu0
  %820 = vmatprep.mubr.f32.mxu0 0.0
  %v821 = vand.u32 %v71, 4294901760
  %v822 = vsub.f32 %v71, %v821
  %v823 = vand.u32 %v822, 4294901760
  %824 = vmatmul.mubr.f32.gmra.mrb[0].mxu0 %v823
  %v825 = vpop.f32.mrb[0].mxu0
  %v826 = vadd.f32 %v637, %v825
  %v827 = vpop.f32.mrb[0].mxu0
  %828 = vmatprep.mubr.f32.mxu0 0.0
  %v829 = vand.u32 %v74, 4294901760
  %v830 = vsub.f32 %v74, %v829
  %v831 = vand.u32 %v830, 4294901760
  %832 = vmatmul.mubr.f32.gmra.mrb[0].mxu0 %v831
  %v833 = vpop.f32.mrb[0].mxu0
  %v834 = vadd.f32 %v644, %v833
  %v835 = vpop.f32.mrb[0].mxu0
  %836 = vmatprep.mubr.f32.mxu0 0.0
  %v837 = vand.u32 %v77, 4294901760
  %v838 = vsub.f32 %v77, %v837
  %v839 = vand.u32 %v838, 4294901760
  %840 = vmatmul.mubr.f32.gmra.mrb[0].mxu0 %v839
  %v841 = vpop.f32.mrb[0].mxu0
  %v842 = vadd.f32 %v651, %v841
  %v843 = vpop.f32.mrb[0].mxu0
  %844 = vmatprep.mubr.f32.mxu0 0.0
  %v845 = vand.u32 %v80, 4294901760
  %v846 = vsub.f32 %v80, %v845
  %v847 = vand.u32 %v846, 4294901760
  %848 = vmatmul.mubr.f32.gmra.mrb[0].mxu0 %v847
  %v849 = vpop.f32.mrb[0].mxu0
  %v850 = vadd.f32 %v658, %v849
  %v851 = vpop.f32.mrb[0].mxu0
  %852 = vmatprep.mubr.f32.mxu0 0.0
  %v853 = vand.u32 %v83, 4294901760
  %v854 = vsub.f32 %v83, %v853
  %v855 = vand.u32 %v854, 4294901760
  %856 = vmatmul.mubr.f32.gmra.mrb[0].mxu0 %v855
  %v857 = vpop.f32.mrb[0].mxu0
  %v858 = vadd.f32 %v665, %v857
  %v859 = vpop.f32.mrb[0].mxu0
  %860 = vmatprep.mubr.f32.mxu0 0.0
  %v861 = vand.u32 %v86, 4294901760
  %v862 = vsub.f32 %v86, %v861
  %v863 = vand.u32 %v862, 4294901760
  %864 = vmatmul.mubr.f32.gmra.mrb[0].mxu0 %v863
  %v865 = vpop.f32.mrb[0].mxu0
  %v866 = vadd.f32 %v672, %v865
  %v867 = vpop.f32.mrb[0].mxu0
  %868 = vmatprep.mubr.f32.mxu0 0.0
  %v869 = vand.u32 %v89, 4294901760
  %v870 = vsub.f32 %v89, %v869
  %v871 = vand.u32 %v870, 4294901760
  %872 = vmatmul.mubr.f32.gmra.mrb[0].mxu0 %v871
  %v873 = vpop.f32.mrb[0].mxu0
  %v874 = vadd.f32 %v679, %v873
  %v875 = vpop.f32.mrb[0].mxu0
  %876 = vmatprep.mubr.f32.mxu0 0.0
  %v877 = vand.u32 %v92, 4294901760
  %v878 = vsub.f32 %v92, %v877
  %v879 = vand.u32 %v878, 4294901760
  %880 = vmatmul.mubr.f32.gmra.mrb[0].mxu0 %v879
  %v881 = vpop.f32.mrb[0].mxu0
  %v882 = vadd.f32 %v686, %v881
  %v883 = vpop.f32.mrb[0].mxu0
  %884 = vmatprep.mubr.f32.mxu0 0.0
  %v885 = vand.u32 %v95, 4294901760
  %v886 = vsub.f32 %v95, %v885
  %v887 = vand.u32 %v886, 4294901760
  %888 = vmatmul.mubr.f32.gmra.mrb[0].mxu0 %v887
  %v889 = vpop.f32.mrb[0].mxu0
  %v890 = vadd.f32 %v693, %v889
  %v891 = vpop.f32.mrb[0].mxu0
  %892 = vdwg.mxu0
  %893 = vmatprep.subr.mxu0 0.0
  %v894 = vand.u32 %v44, 4294901760
  %v895 = vsub.f32 %v44, %v894
  %v896 = vand.u32 %v895, 4294901760
  %897 = vmatpush1.msra.mxu0 %v896
  %898 = vmatprep.subr.mxu0 0.0
  %v899 = vand.u32 %v45, 4294901760
  %v900 = vsub.f32 %v45, %v899
  %v901 = vand.u32 %v900, 4294901760
  %902 = vmatpush1.msra.mxu0 %v901
  %903 = vmatprep.subr.mxu0 0.0
  %v904 = vand.u32 %v46, 4294901760
  %v905 = vsub.f32 %v46, %v904
  %v906 = vand.u32 %v905, 4294901760
  %907 = vmatpush1.msra.mxu0 %v906
  %908 = vmatprep.subr.mxu0 0.0
  %v909 = vand.u32 %v99, 4294901760
  %v910 = vsub.f32 %v99, %v909
  %v911 = vand.u32 %v910, 4294901760
  %912 = vmatpush1.msra.mxu0 %v911
  %913 = vmatprep.subr.mxu0 0.0
  %914 = vmatpush1.msra.mxu0 0.0
  %915 = vmatprep.subr.mxu0 0.0
  %916 = vmatpush1.msra.mxu0 0.0
  %917 = vmatprep.subr.mxu0 0.0
  %918 = vmatpush1.msra.mxu0 0.0
  %919 = vmatprep.subr.mxu0 0.0
  %920 = vmatpush1.msra.mxu0 0.0
  %921 = vmatprep.subr.mxu0 0.0
  %922 = vmatpush1.msra.mxu0 0.0
  %923 = vmatprep.subr.mxu0 0.0
  %924 = vmatpush1.msra.mxu0 0.0
  %925 = vmatprep.subr.mxu0 0.0
  %926 = vmatpush1.msra.mxu0 0.0
  %927 = vmatprep.subr.mxu0 0.0
  %928 = vmatpush1.msra.mxu0 0.0
  %929 = vmatprep.subr.mxu0 0.0
  %930 = vmatpush1.msra.mxu0 0.0
  %931 = vmatprep.subr.mxu0 0.0
  %932 = vmatpush1.msra.mxu0 0.0
  %933 = vmatprep.subr.mxu0 0.0
  %934 = vmatpush1.msra.mxu0 0.0
  %935 = vmatprep.subr.mxu0 0.0
  %936 = vmatpush1.msra.mxu0 0.0
  %937 = vmatprep.subr.mxu0 0.0
  %938 = vmatpush1.msra.mxu0 0.0
  %939 = vmatprep.subr.mxu0 0.0
  %940 = vmatpush1.msra.mxu0 0.0
  %941 = vmatprep.subr.mxu0 0.0
  %942 = vmatpush1.msra.mxu0 0.0
  %943 = vmatprep.subr.mxu0 0.0
  %944 = vmatpush1.msra.mxu0 0.0
  %945 = vmatprep.subr.mxu0 0.0
  %946 = vmatpush1.msra.mxu0 0.0
  %947 = vmatprep.subr.mxu0 0.0
  %948 = vmatpush1.msra.mxu0 0.0
  %949 = vmatprep.subr.mxu0 0.0
  %950 = vmatpush1.msra.mxu0 0.0
  %951 = vmatprep.subr.mxu0 0.0
  %952 = vmatpush1.msra.mxu0 0.0
  %953 = vmatprep.subr.mxu0 0.0
  %954 = vmatpush1.msra.mxu0 0.0
  %955 = vmatprep.subr.mxu0 0.0
  %956 = vmatpush1.msra.mxu0 0.0
  %957 = vmatprep.subr.mxu0 0.0
  %958 = vmatpush1.msra.mxu0 0.0
  %959 = vmatprep.subr.mxu0 0.0
  %960 = vmatpush1.msra.mxu0 0.0
  %961 = vmatprep.subr.mxu0 0.0
  %962 = vmatpush1.msra.mxu0 0.0
  %963 = vmatprep.subr.mxu0 0.0
  %964 = vmatpush1.msra.mxu0 0.0
  %965 = vmatprep.subr.mxu0 0.0
  %966 = vmatpush1.msra.mxu0 0.0
  %967 = vmatprep.subr.mxu0 0.0
  %968 = vmatpush1.msra.mxu0 0.0
  %969 = vmatprep.mubr.f32.mxu0 0.0
  %v970 = vand.u32 %v50, 4294901760
  %971 = vmatmul.mubr.f32.gmra.mrb[0].mxu0 %v970
  %v972 = vpop.f32.mrb[0].mxu0
  %v973 = vadd.f32 %v770, %v972
  %v974 = vpop.f32.mrb[0].mxu0
  %975 = vmatprep.mubr.f32.mxu0 0.0
  %v976 = vand.u32 %v53, 4294901760
  %977 = vmatmul.mubr.f32.gmra.mrb[0].mxu0 %v976
  %v978 = vpop.f32.mrb[0].mxu0
  %v979 = vadd.f32 %v778, %v978
  %v980 = vpop.f32.mrb[0].mxu0
  %981 = vmatprep.mubr.f32.mxu0 0.0
  %v982 = vand.u32 %v56, 4294901760
  %983 = vmatmul.mubr.f32.gmra.mrb[0].mxu0 %v982
  %v984 = vpop.f32.mrb[0].mxu0
  %v985 = vadd.f32 %v786, %v984
  %v986 = vpop.f32.mrb[0].mxu0
  %987 = vmatprep.mubr.f32.mxu0 0.0
  %v988 = vand.u32 %v59, 4294901760
  %989 = vmatmul.mubr.f32.gmra.mrb[0].mxu0 %v988
  %v990 = vpop.f32.mrb[0].mxu0
  %v991 = vadd.f32 %v794, %v990
  %v992 = vpop.f32.mrb[0].mxu0
  %993 = vmatprep.mubr.f32.mxu0 0.0
  %v994 = vand.u32 %v62, 4294901760
  %995 = vmatmul.mubr.f32.gmra.mrb[0].mxu0 %v994
  %v996 = vpop.f32.mrb[0].mxu0
  %v997 = vadd.f32 %v802, %v996
  %v998 = vpop.f32.mrb[0].mxu0
  %999 = vmatprep.mubr.f32.mxu0 0.0
  %v1000 = vand.u32 %v65, 4294901760
  %1001 = vmatmul.mubr.f32.gmra.mrb[0].mxu0 %v1000
  %v1002 = vpop.f32.mrb[0].mxu0
  %v1003 = vadd.f32 %v810, %v1002
  %v1004 = vpop.f32.mrb[0].mxu0
  %1005 = vmatprep.mubr.f32.mxu0 0.0
  %v1006 = vand.u32 %v68, 4294901760
  %1007 = vmatmul.mubr.f32.gmra.mrb[0].mxu0 %v1006
  %v1008 = vpop.f32.mrb[0].mxu0
  %v1009 = vadd.f32 %v818, %v1008
  %v1010 = vpop.f32.mrb[0].mxu0
  %1011 = vmatprep.mubr.f32.mxu0 0.0
  %v1012 = vand.u32 %v71, 4294901760
  %1013 = vmatmul.mubr.f32.gmra.mrb[0].mxu0 %v1012
  %v1014 = vpop.f32.mrb[0].mxu0
  %v1015 = vadd.f32 %v826, %v1014
  %v1016 = vpop.f32.mrb[0].mxu0
  %1017 = vmatprep.mubr.f32.mxu0 0.0
  %v1018 = vand.u32 %v74, 4294901760
  %1019 = vmatmul.mubr.f32.gmra.mrb[0].mxu0 %v1018
  %v1020 = vpop.f32.mrb[0].mxu0
  %v1021 = vadd.f32 %v834, %v1020
  %v1022 = vpop.f32.mrb[0].mxu0
  %1023 = vmatprep.mubr.f32.mxu0 0.0
  %v1024 = vand.u32 %v77, 4294901760
  %1025 = vmatmul.mubr.f32.gmra.mrb[0].mxu0 %v1024
  %v1026 = vpop.f32.mrb[0].mxu0
  %v1027 = vadd.f32 %v842, %v1026
  %v1028 = vpop.f32.mrb[0].mxu0
  %1029 = vmatprep.mubr.f32.mxu0 0.0
  %v1030 = vand.u32 %v80, 4294901760
  %1031 = vmatmul.mubr.f32.gmra.mrb[0].mxu0 %v1030
  %v1032 = vpop.f32.mrb[0].mxu0
  %v1033 = vadd.f32 %v850, %v1032
  %v1034 = vpop.f32.mrb[0].mxu0
  %1035 = vmatprep.mubr.f32.mxu0 0.0
  %v1036 = vand.u32 %v83, 4294901760
  %1037 = vmatmul.mubr.f32.gmra.mrb[0].mxu0 %v1036
  %v1038 = vpop.f32.mrb[0].mxu0
  %v1039 = vadd.f32 %v858, %v1038
  %v1040 = vpop.f32.mrb[0].mxu0
  %1041 = vmatprep.mubr.f32.mxu0 0.0
  %v1042 = vand.u32 %v86, 4294901760
  %1043 = vmatmul.mubr.f32.gmra.mrb[0].mxu0 %v1042
  %v1044 = vpop.f32.mrb[0].mxu0
  %v1045 = vadd.f32 %v866, %v1044
  %v1046 = vpop.f32.mrb[0].mxu0
  %1047 = vmatprep.mubr.f32.mxu0 0.0
  %v1048 = vand.u32 %v89, 4294901760
  %1049 = vmatmul.mubr.f32.gmra.mrb[0].mxu0 %v1048
  %v1050 = vpop.f32.mrb[0].mxu0
  %v1051 = vadd.f32 %v874, %v1050
  %v1052 = vpop.f32.mrb[0].mxu0
  %1053 = vmatprep.mubr.f32.mxu0 0.0
  %v1054 = vand.u32 %v92, 4294901760
  %1055 = vmatmul.mubr.f32.gmra.mrb[0].mxu0 %v1054
  %v1056 = vpop.f32.mrb[0].mxu0
  %v1057 = vadd.f32 %v882, %v1056
  %v1058 = vpop.f32.mrb[0].mxu0
  %1059 = vmatprep.mubr.f32.mxu0 0.0
  %v1060 = vand.u32 %v95, 4294901760
  %1061 = vmatmul.mubr.f32.gmra.mrb[0].mxu0 %v1060
  %v1062 = vpop.f32.mrb[0].mxu0
  %v1063 = vadd.f32 %v890, %v1062
  %v1064 = vpop.f32.mrb[0].mxu0
  %1065 = vdwg.mxu0
  %1066 = vmatprep.subr.mxu0 0.0
  %v1067 = vand.u32 %v44, 4294901760
  %1068 = vmatpush1.msra.mxu0 %v1067
  %1069 = vmatprep.subr.mxu0 0.0
  %v1070 = vand.u32 %v45, 4294901760
  %1071 = vmatpush1.msra.mxu0 %v1070
  %1072 = vmatprep.subr.mxu0 0.0
  %v1073 = vand.u32 %v46, 4294901760
  %1074 = vmatpush1.msra.mxu0 %v1073
  %1075 = vmatprep.subr.mxu0 0.0
  %v1076 = vand.u32 %v99, 4294901760
  %1077 = vmatpush1.msra.mxu0 %v1076
  %1078 = vmatprep.subr.mxu0 0.0
  %1079 = vmatpush1.msra.mxu0 0.0
  %1080 = vmatprep.subr.mxu0 0.0
  %1081 = vmatpush1.msra.mxu0 0.0
  %1082 = vmatprep.subr.mxu0 0.0
  %1083 = vmatpush1.msra.mxu0 0.0
  %1084 = vmatprep.subr.mxu0 0.0
  %1085 = vmatpush1.msra.mxu0 0.0
  %1086 = vmatprep.subr.mxu0 0.0
  %1087 = vmatpush1.msra.mxu0 0.0
  %1088 = vmatprep.subr.mxu0 0.0
  %1089 = vmatpush1.msra.mxu0 0.0
  %1090 = vmatprep.subr.mxu0 0.0
  %1091 = vmatpush1.msra.mxu0 0.0
  %1092 = vmatprep.subr.mxu0 0.0
  %1093 = vmatpush1.msra.mxu0 0.0
  %1094 = vmatprep.subr.mxu0 0.0
  %1095 = vmatpush1.msra.mxu0 0.0
  %1096 = vmatprep.subr.mxu0 0.0
  %1097 = vmatpush1.msra.mxu0 0.0
  %1098 = vmatprep.subr.mxu0 0.0
  %1099 = vmatpush1.msra.mxu0 0.0
  %1100 = vmatprep.subr.mxu0 0.0
  %1101 = vmatpush1.msra.mxu0 0.0
  %1102 = vmatprep.subr.mxu0 0.0
  %1103 = vmatpush1.msra.mxu0 0.0
  %1104 = vmatprep.subr.mxu0 0.0
  %1105 = vmatpush1.msra.mxu0 0.0
  %1106 = vmatprep.subr.mxu0 0.0
  %1107 = vmatpush1.msra.mxu0 0.0
  %1108 = vmatprep.subr.mxu0 0.0
  %1109 = vmatpush1.msra.mxu0 0.0
  %1110 = vmatprep.subr.mxu0 0.0
  %1111 = vmatpush1.msra.mxu0 0.0
  %1112 = vmatprep.subr.mxu0 0.0
  %1113 = vmatpush1.msra.mxu0 0.0
  %1114 = vmatprep.subr.mxu0 0.0
  %1115 = vmatpush1.msra.mxu0 0.0
  %1116 = vmatprep.subr.mxu0 0.0
  %1117 = vmatpush1.msra.mxu0 0.0
  %1118 = vmatprep.subr.mxu0 0.0
  %1119 = vmatpush1.msra.mxu0 0.0
  %1120 = vmatprep.subr.mxu0 0.0
  %1121 = vmatpush1.msra.mxu0 0.0
  %1122 = vmatprep.subr.mxu0 0.0
  %1123 = vmatpush1.msra.mxu0 0.0
  %1124 = vmatprep.subr.mxu0 0.0
  %1125 = vmatpush1.msra.mxu0 0.0
  %1126 = vmatprep.subr.mxu0 0.0
  %1127 = vmatpush1.msra.mxu0 0.0
  %1128 = vmatprep.subr.mxu0 0.0
  %1129 = vmatpush1.msra.mxu0 0.0
  %1130 = vmatprep.subr.mxu0 0.0
  %1131 = vmatpush1.msra.mxu0 0.0
  %1132 = vmatprep.subr.mxu0 0.0
  %1133 = vmatpush1.msra.mxu0 0.0
  %1134 = vmatprep.mubr.f32.mxu0 0.0
  %v1135 = vand.u32 %v50, 4294901760
  %1136 = vmatmul.mubr.f32.gmra.mrb[0].mxu0 %v1135
  %v1137 = vpop.f32.mrb[0].mxu0
  %v1138 = vadd.f32 %v973, %v1137
  %v1139 = vpop.f32.mrb[0].mxu0
  %1140 = vmatprep.mubr.f32.mxu0 0.0
  %v1141 = vand.u32 %v53, 4294901760
  %1142 = vmatmul.mubr.f32.gmra.mrb[0].mxu0 %v1141
  %v1143 = vpop.f32.mrb[0].mxu0
  %v1144 = vadd.f32 %v979, %v1143
  %v1145 = vpop.f32.mrb[0].mxu0
  %1146 = vmatprep.mubr.f32.mxu0 0.0
  %v1147 = vand.u32 %v56, 4294901760
  %1148 = vmatmul.mubr.f32.gmra.mrb[0].mxu0 %v1147
  %v1149 = vpop.f32.mrb[0].mxu0
  %v1150 = vadd.f32 %v985, %v1149
  %v1151 = vpop.f32.mrb[0].mxu0
  %1152 = vmatprep.mubr.f32.mxu0 0.0
  %v1153 = vand.u32 %v59, 4294901760
  %1154 = vmatmul.mubr.f32.gmra.mrb[0].mxu0 %v1153
  %v1155 = vpop.f32.mrb[0].mxu0
  %v1156 = vadd.f32 %v991, %v1155
  %v1157 = vpop.f32.mrb[0].mxu0
  %1158 = vmatprep.mubr.f32.mxu0 0.0
  %v1159 = vand.u32 %v62, 4294901760
  %1160 = vmatmul.mubr.f32.gmra.mrb[0].mxu0 %v1159
  %v1161 = vpop.f32.mrb[0].mxu0
  %v1162 = vadd.f32 %v997, %v1161
  %v1163 = vpop.f32.mrb[0].mxu0
  %1164 = vmatprep.mubr.f32.mxu0 0.0
  %v1165 = vand.u32 %v65, 4294901760
  %1166 = vmatmul.mubr.f32.gmra.mrb[0].mxu0 %v1165
  %v1167 = vpop.f32.mrb[0].mxu0
  %v1168 = vadd.f32 %v1003, %v1167
  %v1169 = vpop.f32.mrb[0].mxu0
  %1170 = vmatprep.mubr.f32.mxu0 0.0
  %v1171 = vand.u32 %v68, 4294901760
  %1172 = vmatmul.mubr.f32.gmra.mrb[0].mxu0 %v1171
  %v1173 = vpop.f32.mrb[0].mxu0
  %v1174 = vadd.f32 %v1009, %v1173
  %v1175 = vpop.f32.mrb[0].mxu0
  %1176 = vmatprep.mubr.f32.mxu0 0.0
  %v1177 = vand.u32 %v71, 4294901760
  %1178 = vmatmul.mubr.f32.gmra.mrb[0].mxu0 %v1177
  %v1179 = vpop.f32.mrb[0].mxu0
  %v1180 = vadd.f32 %v1015, %v1179
  %v1181 = vpop.f32.mrb[0].mxu0
  %1182 = vmatprep.mubr.f32.mxu0 0.0
  %v1183 = vand.u32 %v74, 4294901760
  %1184 = vmatmul.mubr.f32.gmra.mrb[0].mxu0 %v1183
  %v1185 = vpop.f32.mrb[0].mxu0
  %v1186 = vadd.f32 %v1021, %v1185
  %v1187 = vpop.f32.mrb[0].mxu0
  %1188 = vmatprep.mubr.f32.mxu0 0.0
  %v1189 = vand.u32 %v77, 4294901760
  %1190 = vmatmul.mubr.f32.gmra.mrb[0].mxu0 %v1189
  %v1191 = vpop.f32.mrb[0].mxu0
  %v1192 = vadd.f32 %v1027, %v1191
  %v1193 = vpop.f32.mrb[0].mxu0
  %1194 = vmatprep.mubr.f32.mxu0 0.0
  %v1195 = vand.u32 %v80, 4294901760
  %1196 = vmatmul.mubr.f32.gmra.mrb[0].mxu0 %v1195
  %v1197 = vpop.f32.mrb[0].mxu0
  %v1198 = vadd.f32 %v1033, %v1197
  %v1199 = vpop.f32.mrb[0].mxu0
  %1200 = vmatprep.mubr.f32.mxu0 0.0
  %v1201 = vand.u32 %v83, 4294901760
  %1202 = vmatmul.mubr.f32.gmra.mrb[0].mxu0 %v1201
  %v1203 = vpop.f32.mrb[0].mxu0
  %v1204 = vadd.f32 %v1039, %v1203
  %v1205 = vpop.f32.mrb[0].mxu0
  %1206 = vmatprep.mubr.f32.mxu0 0.0
  %v1207 = vand.u32 %v86, 4294901760
  %1208 = vmatmul.mubr.f32.gmra.mrb[0].mxu0 %v1207
  %v1209 = vpop.f32.mrb[0].mxu0
  %v1210 = vadd.f32 %v1045, %v1209
  %v1211 = vpop.f32.mrb[0].mxu0
  %1212 = vmatprep.mubr.f32.mxu0 0.0
  %v1213 = vand.u32 %v89, 4294901760
  %1214 = vmatmul.mubr.f32.gmra.mrb[0].mxu0 %v1213
  %v1215 = vpop.f32.mrb[0].mxu0
  %v1216 = vadd.f32 %v1051, %v1215
  %v1217 = vpop.f32.mrb[0].mxu0
  %1218 = vmatprep.mubr.f32.mxu0 0.0
  %v1219 = vand.u32 %v92, 4294901760
  %1220 = vmatmul.mubr.f32.gmra.mrb[0].mxu0 %v1219
  %v1221 = vpop.f32.mrb[0].mxu0
  %v1222 = vadd.f32 %v1057, %v1221
  %v1223 = vpop.f32.mrb[0].mxu0
  %1224 = vmatprep.mubr.f32.mxu0 0.0
  %v1225 = vand.u32 %v95, 4294901760
  %1226 = vmatmul.mubr.f32.gmra.mrb[0].mxu0 %v1225
  %v1227 = vpop.f32.mrb[0].mxu0
  %v1228 = vadd.f32 %v1063, %v1227
  %v1229 = vpop.f32.mrb[0].mxu0
  %1230 = vdwg.mxu0
  %v1231 = vld [vmem:[%s2] sm:$0x1]
  %v1233 = vlaneseq
  %v1234 = vshrl.u32 %v1233, 7
  %v1235 = vsub.s32 0, %v1234
  %v1236 = vrot.slane %v1231, %v1235
  %v1238 = vmul.f32 %v1138, %v1236
  %v1239 = vmul.f32 %v1144, %v1236
  %v1240 = vmul.f32 %v1150, %v1236
  %v1241 = vmul.f32 %v1156, %v1236
  %v1242 = vmul.f32 %v1162, %v1236
  %v1243 = vmul.f32 %v1168, %v1236
  %v1244 = vmul.f32 %v1174, %v1236
  %v1245 = vmul.f32 %v1180, %v1236
  %v1246 = vmul.f32 %v1186, %v1236
  %v1247 = vmul.f32 %v1192, %v1236
  %v1248 = vmul.f32 %v1198, %v1236
  %v1249 = vmul.f32 %v1204, %v1236
  %v1250 = vmul.f32 %v1210, %v1236
  %v1251 = vmul.f32 %v1216, %v1236
  %v1252 = vmul.f32 %v1222, %v1236
  %v1253 = vmul.f32 %v1228, %v1236
  %v1254 = vld [vmem:[%s3] sm:$0x1]
  %v1256 = vlaneseq
  %v1257 = vshrl.u32 %v1256, 7
  %v1258 = vsub.s32 0, %v1257
  %v1259 = vrot.slane %v1254, %v1258
  %v1261 = vadd.f32 %v1238, %v1259
  %v1262 = vadd.f32 %v1239, %v1259
  %v1263 = vadd.f32 %v1240, %v1259
  %v1264 = vadd.f32 %v1241, %v1259
  %v1265 = vadd.f32 %v1242, %v1259
  %v1266 = vadd.f32 %v1243, %v1259
  %v1267 = vadd.f32 %v1244, %v1259
  %v1268 = vadd.f32 %v1245, %v1259
  %v1269 = vadd.f32 %v1246, %v1259
  %v1270 = vadd.f32 %v1247, %v1259
  %v1271 = vadd.f32 %v1248, %v1259
  %v1272 = vadd.f32 %v1249, %v1259
  %v1273 = vadd.f32 %v1250, %v1259
  %v1274 = vadd.f32 %v1251, %v1259
  %v1275 = vadd.f32 %v1252, %v1259
  %v1276 = vadd.f32 %v1253, %v1259
  %v1277 = vmax.f32 %v1261, 0.0
  %v1278 = vmax.f32 %v1262, 0.0
  %v1279 = vmax.f32 %v1263, 0.0
  %v1280 = vmax.f32 %v1264, 0.0
  %v1281 = vmax.f32 %v1265, 0.0
  %v1282 = vmax.f32 %v1266, 0.0
  %v1283 = vmax.f32 %v1267, 0.0
  %v1284 = vmax.f32 %v1268, 0.0
  %v1285 = vmax.f32 %v1269, 0.0
  %v1286 = vmax.f32 %v1270, 0.0
  %v1287 = vmax.f32 %v1271, 0.0
  %v1288 = vmax.f32 %v1272, 0.0
  %v1289 = vmax.f32 %v1273, 0.0
  %v1290 = vmax.f32 %v1274, 0.0
  %v1291 = vmax.f32 %v1275, 0.0
  %v1292 = vmax.f32 %v1276, 0.0
  %vm1293 = vcmask 261120
  %1294 = vst.msk [vmem:[%s7] sm:$0xff] %vm1293, %v1277
  %1295 = vst.msk [vmem:[%s7 + $0x8] sm:$0xff] %vm1293, %v1278
  %1296 = vst.msk [vmem:[%s7 + $0x10] sm:$0xff] %vm1293, %v1279
  %1297 = vst.msk [vmem:[%s7 + $0x18] sm:$0xff] %vm1293, %v1280
  %1298 = vst.msk [vmem:[%s7 + $0x20] sm:$0xff] %vm1293, %v1281
  %1299 = vst.msk [vmem:[%s7 + $0x28] sm:$0xff] %vm1293, %v1282
  %1300 = vst.msk [vmem:[%s7 + $0x30] sm:$0xff] %vm1293, %v1283
  %1301 = vst.msk [vmem:[%s7 + $0x38] sm:$0xff] %vm1293, %v1284
  %1302 = vst.msk [vmem:[%s7 + $0x40] sm:$0xff] %vm1293, %v1285
  %1303 = vst.msk [vmem:[%s7 + $0x48] sm:$0xff] %vm1293, %v1286
  %1304 = vst.msk [vmem:[%s7 + $0x50] sm:$0xff] %vm1293, %v1287
  %1305 = vst.msk [vmem:[%s7 + $0x58] sm:$0xff] %vm1293, %v1288
  %1306 = vst.msk [vmem:[%s7 + $0x60] sm:$0xff] %vm1293, %v1289
  %1307 = vst.msk [vmem:[%s7 + $0x68] sm:$0xff] %vm1293, %v1290
  %1308 = vst.msk [vmem:[%s7 + $0x70] sm:$0xff] %vm1293, %v1291
  %1309 = vst.msk [vmem:[%s7 + $0x78] sm:$0xff] %vm1293, %v1292
  %v1310 = vld [vmem:[%s4] sm:$0xff]
  %v1311 = vld [vmem:[%s4 + $0x8] sm:$0xff]
  %v1312 = vld [vmem:[%s4 + $0x10] sm:$0xff]
  %v1313 = vld [vmem:[%s4 + $0x18] sm:$0xff]
  %v1314 = vld [vmem:[%s4 + $0x20] sm:$0xff]
  %v1315 = vld [vmem:[%s4 + $0x28] sm:$0xff]
  %v1316 = vld [vmem:[%s4 + $0x30] sm:$0xff]
  %v1317 = vld [vmem:[%s4 + $0x38] sm:$0xff]
  %v1319 = vsel %vm1293, %v1277, 0
  %v1322 = vsel %vm1293, %v1278, 0
  %v1325 = vsel %vm1293, %v1279, 0
  %v1328 = vsel %vm1293, %v1280, 0
  %v1331 = vsel %vm1293, %v1281, 0
  %v1334 = vsel %vm1293, %v1282, 0
  %v1337 = vsel %vm1293, %v1283, 0
  %v1340 = vsel %vm1293, %v1284, 0
  %v1343 = vsel %vm1293, %v1285, 0
  %v1346 = vsel %vm1293, %v1286, 0
  %v1349 = vsel %vm1293, %v1287, 0
  %v1352 = vsel %vm1293, %v1288, 0
  %v1355 = vsel %vm1293, %v1289, 0
  %v1358 = vsel %vm1293, %v1290, 0
  %v1361 = vsel %vm1293, %v1291, 0
  %v1364 = vsel %vm1293, %v1292, 0
  %v1366 = vand.u32 %v1311, 4294901760
  %1367 = vmatprep.subr.mxu0 %v1366
  %v1368 = vand.u32 %v1310, 4294901760
  %1369 = vmatpush1.msra.mxu0 %v1368
  %v1370 = vand.u32 %v1313, 4294901760
  %1371 = vmatprep.subr.mxu0 %v1370
  %v1372 = vand.u32 %v1312, 4294901760
  %1373 = vmatpush1.msra.mxu0 %v1372
  %v1374 = vand.u32 %v1315, 4294901760
  %1375 = vmatprep.subr.mxu0 %v1374
  %v1376 = vand.u32 %v1314, 4294901760
  %1377 = vmatpush1.msra.mxu0 %v1376
  %v1378 = vand.u32 %v1317, 4294901760
  %1379 = vmatprep.subr.mxu0 %v1378
  %v1380 = vand.u32 %v1316, 4294901760
  %1381 = vmatpush1.msra.mxu0 %v1380
  %1382 = vmatprep.subr.mxu0 0.0
  %1383 = vmatpush1.msra.mxu0 0.0
  %1384 = vmatprep.subr.mxu0 0.0
  %1385 = vmatpush1.msra.mxu0 0.0
  %1386 = vmatprep.subr.mxu0 0.0
  %1387 = vmatpush1.msra.mxu0 0.0
  %1388 = vmatprep.subr.mxu0 0.0
  %1389 = vmatpush1.msra.mxu0 0.0
  %1390 = vmatprep.subr.mxu0 0.0
  %1391 = vmatpush1.msra.mxu0 0.0
  %1392 = vmatprep.subr.mxu0 0.0
  %1393 = vmatpush1.msra.mxu0 0.0
  %1394 = vmatprep.subr.mxu0 0.0
  %1395 = vmatpush1.msra.mxu0 0.0
  %1396 = vmatprep.subr.mxu0 0.0
  %1397 = vmatpush1.msra.mxu0 0.0
  %1398 = vmatprep.subr.mxu0 0.0
  %1399 = vmatpush1.msra.mxu0 0.0
  %1400 = vmatprep.subr.mxu0 0.0
  %1401 = vmatpush1.msra.mxu0 0.0
  %1402 = vmatprep.subr.mxu0 0.0
  %1403 = vmatpush1.msra.mxu0 0.0
  %1404 = vmatprep.subr.mxu0 0.0
  %1405 = vmatpush1.msra.mxu0 0.0
  %1406 = vmatprep.subr.mxu0 0.0
  %1407 = vmatpush1.msra.mxu0 0.0
  %1408 = vmatprep.subr.mxu0 0.0
  %1409 = vmatpush1.msra.mxu0 0.0
  %1410 = vmatprep.subr.mxu0 0.0
  %1411 = vmatpush1.msra.mxu0 0.0
  %1412 = vmatprep.subr.mxu0 0.0
  %1413 = vmatpush1.msra.mxu0 0.0
  %1414 = vmatprep.subr.mxu0 0.0
  %1415 = vmatpush1.msra.mxu0 0.0
  %1416 = vmatprep.subr.mxu0 0.0
  %1417 = vmatpush1.msra.mxu0 0.0
  %1418 = vmatprep.subr.mxu0 0.0
  %1419 = vmatpush1.msra.mxu0 0.0
  %1420 = vmatprep.subr.mxu0 0.0
  %1421 = vmatpush1.msra.mxu0 0.0
  %1422 = vmatprep.subr.mxu0 0.0
  %1423 = vmatpush1.msra.mxu0 0.0
  %1424 = vmatprep.subr.mxu0 0.0
  %1425 = vmatpush1.msra.mxu0 0.0
  %1426 = vmatprep.subr.mxu0 0.0
  %1427 = vmatpush1.msra.mxu0 0.0
  %1428 = vmatprep.subr.mxu0 0.0
  %1429 = vmatpush1.msra.mxu0 0.0
  %1430 = vmatprep.subr.mxu0 0.0
  %1431 = vmatpush1.msra.mxu0 0.0
  %1432 = vmatprep.subr.mxu0 0.0
  %1433 = vmatpush1.msra.mxu0 0.0
  %1434 = vmatprep.subr.mxu0 0.0
  %1435 = vmatpush1.msra.mxu0 0.0
  %1436 = vmatprep.subr.mxu0 0.0
  %1437 = vmatpush1.msra.mxu0 0.0
  %1438 = vmatprep.mubr.f32.mxu0 0.0
  %v1439 = vand.u32 %v1319, 4294901760
  %v1440 = vsub.f32 %v1319, %v1439
  %v1441 = vand.u32 %v1440, 4294901760
  %v1442 = vsub.f32 %v1440, %v1441
  %v1443 = vand.u32 %v1442, 4294901760
  %1444 = vmatmul.mubr.f32.gmra.mrb[0].mxu0 %v1443
  %v1445 = vpop.f32.mrb[0].mxu0
  %v1446 = vadd.f32 0.0, %v1445
  %v1447 = vpop.f32.mrb[0].mxu0
  %v1448 = vadd.f32 0.0, %v1447
  %1449 = vmatprep.mubr.f32.mxu0 0.0
  %v1450 = vand.u32 %v1322, 4294901760
  %v1451 = vsub.f32 %v1322, %v1450
  %v1452 = vand.u32 %v1451, 4294901760
  %v1453 = vsub.f32 %v1451, %v1452
  %v1454 = vand.u32 %v1453, 4294901760
  %1455 = vmatmul.mubr.f32.gmra.mrb[0].mxu0 %v1454
  %v1456 = vpop.f32.mrb[0].mxu0
  %v1457 = vadd.f32 0.0, %v1456
  %v1458 = vpop.f32.mrb[0].mxu0
  %v1459 = vadd.f32 0.0, %v1458
  %1460 = vmatprep.mubr.f32.mxu0 0.0
  %v1461 = vand.u32 %v1325, 4294901760
  %v1462 = vsub.f32 %v1325, %v1461
  %v1463 = vand.u32 %v1462, 4294901760
  %v1464 = vsub.f32 %v1462, %v1463
  %v1465 = vand.u32 %v1464, 4294901760
  %1466 = vmatmul.mubr.f32.gmra.mrb[0].mxu0 %v1465
  %v1467 = vpop.f32.mrb[0].mxu0
  %v1468 = vadd.f32 0.0, %v1467
  %v1469 = vpop.f32.mrb[0].mxu0
  %v1470 = vadd.f32 0.0, %v1469
  %1471 = vmatprep.mubr.f32.mxu0 0.0
  %v1472 = vand.u32 %v1328, 4294901760
  %v1473 = vsub.f32 %v1328, %v1472
  %v1474 = vand.u32 %v1473, 4294901760
  %v1475 = vsub.f32 %v1473, %v1474
  %v1476 = vand.u32 %v1475, 4294901760
  %1477 = vmatmul.mubr.f32.gmra.mrb[0].mxu0 %v1476
  %v1478 = vpop.f32.mrb[0].mxu0
  %v1479 = vadd.f32 0.0, %v1478
  %v1480 = vpop.f32.mrb[0].mxu0
  %v1481 = vadd.f32 0.0, %v1480
  %1482 = vmatprep.mubr.f32.mxu0 0.0
  %v1483 = vand.u32 %v1331, 4294901760
  %v1484 = vsub.f32 %v1331, %v1483
  %v1485 = vand.u32 %v1484, 4294901760
  %v1486 = vsub.f32 %v1484, %v1485
  %v1487 = vand.u32 %v1486, 4294901760
  %1488 = vmatmul.mubr.f32.gmra.mrb[0].mxu0 %v1487
  %v1489 = vpop.f32.mrb[0].mxu0
  %v1490 = vadd.f32 0.0, %v1489
  %v1491 = vpop.f32.mrb[0].mxu0
  %v1492 = vadd.f32 0.0, %v1491
  %1493 = vmatprep.mubr.f32.mxu0 0.0
  %v1494 = vand.u32 %v1334, 4294901760
  %v1495 = vsub.f32 %v1334, %v1494
  %v1496 = vand.u32 %v1495, 4294901760
  %v1497 = vsub.f32 %v1495, %v1496
  %v1498 = vand.u32 %v1497, 4294901760
  %1499 = vmatmul.mubr.f32.gmra.mrb[0].mxu0 %v1498
  %v1500 = vpop.f32.mrb[0].mxu0
  %v1501 = vadd.f32 0.0, %v1500
  %v1502 = vpop.f32.mrb[0].mxu0
  %v1503 = vadd.f32 0.0, %v1502
  %1504 = vmatprep.mubr.f32.mxu0 0.0
  %v1505 = vand.u32 %v1337, 4294901760
  %v1506 = vsub.f32 %v1337, %v1505
  %v1507 = vand.u32 %v1506, 4294901760
  %v1508 = vsub.f32 %v1506, %v1507
  %v1509 = vand.u32 %v1508, 4294901760
  %1510 = vmatmul.mubr.f32.gmra.mrb[0].mxu0 %v1509
  %v1511 = vpop.f32.mrb[0].mxu0
  %v1512 = vadd.f32 0.0, %v1511
  %v1513 = vpop.f32.mrb[0].mxu0
  %v1514 = vadd.f32 0.0, %v1513
  %1515 = vmatprep.mubr.f32.mxu0 0.0
  %v1516 = vand.u32 %v1340, 4294901760
  %v1517 = vsub.f32 %v1340, %v1516
  %v1518 = vand.u32 %v1517, 4294901760
  %v1519 = vsub.f32 %v1517, %v1518
  %v1520 = vand.u32 %v1519, 4294901760
  %1521 = vmatmul.mubr.f32.gmra.mrb[0].mxu0 %v1520
  %v1522 = vpop.f32.mrb[0].mxu0
  %v1523 = vadd.f32 0.0, %v1522
  %v1524 = vpop.f32.mrb[0].mxu0
  %v1525 = vadd.f32 0.0, %v1524
  %1526 = vmatprep.mubr.f32.mxu0 0.0
  %v1527 = vand.u32 %v1343, 4294901760
  %v1528 = vsub.f32 %v1343, %v1527
  %v1529 = vand.u32 %v1528, 4294901760
  %v1530 = vsub.f32 %v1528, %v1529
  %v1531 = vand.u32 %v1530, 4294901760
  %1532 = vmatmul.mubr.f32.gmra.mrb[0].mxu0 %v1531
  %v1533 = vpop.f32.mrb[0].mxu0
  %v1534 = vadd.f32 0.0, %v1533
  %v1535 = vpop.f32.mrb[0].mxu0
  %v1536 = vadd.f32 0.0, %v1535
  %1537 = vmatprep.mubr.f32.mxu0 0.0
  %v1538 = vand.u32 %v1346, 4294901760
  %v1539 = vsub.f32 %v1346, %v1538
  %v1540 = vand.u32 %v1539, 4294901760
  %v1541 = vsub.f32 %v1539, %v1540
  %v1542 = vand.u32 %v1541, 4294901760
  %1543 = vmatmul.mubr.f32.gmra.mrb[0].mxu0 %v1542
  %v1544 = vpop.f32.mrb[0].mxu0
  %v1545 = vadd.f32 0.0, %v1544
  %v1546 = vpop.f32.mrb[0].mxu0
  %v1547 = vadd.f32 0.0, %v1546
  %1548 = vmatprep.mubr.f32.mxu0 0.0
  %v1549 = vand.u32 %v1349, 4294901760
  %v1550 = vsub.f32 %v1349, %v1549
  %v1551 = vand.u32 %v1550, 4294901760
  %v1552 = vsub.f32 %v1550, %v1551
  %v1553 = vand.u32 %v1552, 4294901760
  %1554 = vmatmul.mubr.f32.gmra.mrb[0].mxu0 %v1553
  %v1555 = vpop.f32.mrb[0].mxu0
  %v1556 = vadd.f32 0.0, %v1555
  %v1557 = vpop.f32.mrb[0].mxu0
  %v1558 = vadd.f32 0.0, %v1557
  %1559 = vmatprep.mubr.f32.mxu0 0.0
  %v1560 = vand.u32 %v1352, 4294901760
  %v1561 = vsub.f32 %v1352, %v1560
  %v1562 = vand.u32 %v1561, 4294901760
  %v1563 = vsub.f32 %v1561, %v1562
  %v1564 = vand.u32 %v1563, 4294901760
  %1565 = vmatmul.mubr.f32.gmra.mrb[0].mxu0 %v1564
  %v1566 = vpop.f32.mrb[0].mxu0
  %v1567 = vadd.f32 0.0, %v1566
  %v1568 = vpop.f32.mrb[0].mxu0
  %v1569 = vadd.f32 0.0, %v1568
  %1570 = vmatprep.mubr.f32.mxu0 0.0
  %v1571 = vand.u32 %v1355, 4294901760
  %v1572 = vsub.f32 %v1355, %v1571
  %v1573 = vand.u32 %v1572, 4294901760
  %v1574 = vsub.f32 %v1572, %v1573
  %v1575 = vand.u32 %v1574, 4294901760
  %1576 = vmatmul.mubr.f32.gmra.mrb[0].mxu0 %v1575
  %v1577 = vpop.f32.mrb[0].mxu0
  %v1578 = vadd.f32 0.0, %v1577
  %v1579 = vpop.f32.mrb[0].mxu0
  %v1580 = vadd.f32 0.0, %v1579
  %1581 = vmatprep.mubr.f32.mxu0 0.0
  %v1582 = vand.u32 %v1358, 4294901760
  %v1583 = vsub.f32 %v1358, %v1582
  %v1584 = vand.u32 %v1583, 4294901760
  %v1585 = vsub.f32 %v1583, %v1584
  %v1586 = vand.u32 %v1585, 4294901760
  %1587 = vmatmul.mubr.f32.gmra.mrb[0].mxu0 %v1586
  %v1588 = vpop.f32.mrb[0].mxu0
  %v1589 = vadd.f32 0.0, %v1588
  %v1590 = vpop.f32.mrb[0].mxu0
  %v1591 = vadd.f32 0.0, %v1590
  %1592 = vmatprep.mubr.f32.mxu0 0.0
  %v1593 = vand.u32 %v1361, 4294901760
  %v1594 = vsub.f32 %v1361, %v1593
  %v1595 = vand.u32 %v1594, 4294901760
  %v1596 = vsub.f32 %v1594, %v1595
  %v1597 = vand.u32 %v1596, 4294901760
  %1598 = vmatmul.mubr.f32.gmra.mrb[0].mxu0 %v1597
  %v1599 = vpop.f32.mrb[0].mxu0
  %v1600 = vadd.f32 0.0, %v1599
  %v1601 = vpop.f32.mrb[0].mxu0
  %v1602 = vadd.f32 0.0, %v1601
  %1603 = vmatprep.mubr.f32.mxu0 0.0
  %v1604 = vand.u32 %v1364, 4294901760
  %v1605 = vsub.f32 %v1364, %v1604
  %v1606 = vand.u32 %v1605, 4294901760
  %v1607 = vsub.f32 %v1605, %v1606
  %v1608 = vand.u32 %v1607, 4294901760
  %1609 = vmatmul.mubr.f32.gmra.mrb[0].mxu0 %v1608
  %v1610 = vpop.f32.mrb[0].mxu0
  %v1611 = vadd.f32 0.0, %v1610
  %v1612 = vpop.f32.mrb[0].mxu0
  %v1613 = vadd.f32 0.0, %v1612
  %1614 = vdwg.mxu0
  %v1615 = vand.u32 %v1311, 4294901760
  %v1616 = vsub.f32 %v1311, %v1615
  %v1617 = vand.u32 %v1616, 4294901760
  %v1618 = vsub.f32 %v1616, %v1617
  %v1619 = vand.u32 %v1618, 4294901760
  %1620 = vmatprep.subr.mxu0 %v1619
  %v1621 = vand.u32 %v1310, 4294901760
  %v1622 = vsub.f32 %v1310, %v1621
  %v1623 = vand.u32 %v1622, 4294901760
  %v1624 = vsub.f32 %v1622, %v1623
  %v1625 = vand.u32 %v1624, 4294901760
  %1626 = vmatpush1.msra.mxu0 %v1625
  %v1627 = vand.u32 %v1313, 4294901760
  %v1628 = vsub.f32 %v1313, %v1627
  %v1629 = vand.u32 %v1628, 4294901760
  %v1630 = vsub.f32 %v1628, %v1629
  %v1631 = vand.u32 %v1630, 4294901760
  %1632 = vmatprep.subr.mxu0 %v1631
  %v1633 = vand.u32 %v1312, 4294901760
  %v1634 = vsub.f32 %v1312, %v1633
  %v1635 = vand.u32 %v1634, 4294901760
  %v1636 = vsub.f32 %v1634, %v1635
  %v1637 = vand.u32 %v1636, 4294901760
  %1638 = vmatpush1.msra.mxu0 %v1637
  %v1639 = vand.u32 %v1315, 4294901760
  %v1640 = vsub.f32 %v1315, %v1639
  %v1641 = vand.u32 %v1640, 4294901760
  %v1642 = vsub.f32 %v1640, %v1641
  %v1643 = vand.u32 %v1642, 4294901760
  %1644 = vmatprep.subr.mxu0 %v1643
  %v1645 = vand.u32 %v1314, 4294901760
  %v1646 = vsub.f32 %v1314, %v1645
  %v1647 = vand.u32 %v1646, 4294901760
  %v1648 = vsub.f32 %v1646, %v1647
  %v1649 = vand.u32 %v1648, 4294901760
  %1650 = vmatpush1.msra.mxu0 %v1649
  %v1651 = vand.u32 %v1317, 4294901760
  %v1652 = vsub.f32 %v1317, %v1651
  %v1653 = vand.u32 %v1652, 4294901760
  %v1654 = vsub.f32 %v1652, %v1653
  %v1655 = vand.u32 %v1654, 4294901760
  %1656 = vmatprep.subr.mxu0 %v1655
  %v1657 = vand.u32 %v1316, 4294901760
  %v1658 = vsub.f32 %v1316, %v1657
  %v1659 = vand.u32 %v1658, 4294901760
  %v1660 = vsub.f32 %v1658, %v1659
  %v1661 = vand.u32 %v1660, 4294901760
  %1662 = vmatpush1.msra.mxu0 %v1661
  %1663 = vmatprep.subr.mxu0 0.0
  %1664 = vmatpush1.msra.mxu0 0.0
  %1665 = vmatprep.subr.mxu0 0.0
  %1666 = vmatpush1.msra.mxu0 0.0
  %1667 = vmatprep.subr.mxu0 0.0
  %1668 = vmatpush1.msra.mxu0 0.0
  %1669 = vmatprep.subr.mxu0 0.0
  %1670 = vmatpush1.msra.mxu0 0.0
  %1671 = vmatprep.subr.mxu0 0.0
  %1672 = vmatpush1.msra.mxu0 0.0
  %1673 = vmatprep.subr.mxu0 0.0
  %1674 = vmatpush1.msra.mxu0 0.0
  %1675 = vmatprep.subr.mxu0 0.0
  %1676 = vmatpush1.msra.mxu0 0.0
  %1677 = vmatprep.subr.mxu0 0.0
  %1678 = vmatpush1.msra.mxu0 0.0
  %1679 = vmatprep.subr.mxu0 0.0
  %1680 = vmatpush1.msra.mxu0 0.0
  %1681 = vmatprep.subr.mxu0 0.0
  %1682 = vmatpush1.msra.mxu0 0.0
  %1683 = vmatprep.subr.mxu0 0.0
  %1684 = vmatpush1.msra.mxu0 0.0
  %1685 = vmatprep.subr.mxu0 0.0
  %1686 = vmatpush1.msra.mxu0 0.0
  %1687 = vmatprep.subr.mxu0 0.0
  %1688 = vmatpush1.msra.mxu0 0.0
  %1689 = vmatprep.subr.mxu0 0.0
  %1690 = vmatpush1.msra.mxu0 0.0
  %1691 = vmatprep.subr.mxu0 0.0
  %1692 = vmatpush1.msra.mxu0 0.0
  %1693 = vmatprep.subr.mxu0 0.0
  %1694 = vmatpush1.msra.mxu0 0.0
  %1695 = vmatprep.subr.mxu0 0.0
  %1696 = vmatpush1.msra.mxu0 0.0
  %1697 = vmatprep.subr.mxu0 0.0
  %1698 = vmatpush1.msra.mxu0 0.0
  %1699 = vmatprep.subr.mxu0 0.0
  %1700 = vmatpush1.msra.mxu0 0.0
  %1701 = vmatprep.subr.mxu0 0.0
  %1702 = vmatpush1.msra.mxu0 0.0
  %1703 = vmatprep.subr.mxu0 0.0
  %1704 = vmatpush1.msra.mxu0 0.0
  %1705 = vmatprep.subr.mxu0 0.0
  %1706 = vmatpush1.msra.mxu0 0.0
  %1707 = vmatprep.subr.mxu0 0.0
  %1708 = vmatpush1.msra.mxu0 0.0
  %1709 = vmatprep.subr.mxu0 0.0
  %1710 = vmatpush1.msra.mxu0 0.0
  %1711 = vmatprep.subr.mxu0 0.0
  %1712 = vmatpush1.msra.mxu0 0.0
  %1713 = vmatprep.subr.mxu0 0.0
  %1714 = vmatpush1.msra.mxu0 0.0
  %1715 = vmatprep.subr.mxu0 0.0
  %1716 = vmatpush1.msra.mxu0 0.0
  %1717 = vmatprep.subr.mxu0 0.0
  %1718 = vmatpush1.msra.mxu0 0.0
  %1719 = vmatprep.mubr.f32.mxu0 0.0
  %v1720 = vand.u32 %v1319, 4294901760
  %1721 = vmatmul.mubr.f32.gmra.mrb[0].mxu0 %v1720
  %v1722 = vpop.f32.mrb[0].mxu0
  %v1723 = vadd.f32 %v1446, %v1722
  %v1724 = vpop.f32.mrb[0].mxu0
  %v1725 = vadd.f32 %v1448, %v1724
  %1726 = vmatprep.mubr.f32.mxu0 0.0
  %v1727 = vand.u32 %v1322, 4294901760
  %1728 = vmatmul.mubr.f32.gmra.mrb[0].mxu0 %v1727
  %v1729 = vpop.f32.mrb[0].mxu0
  %v1730 = vadd.f32 %v1457, %v1729
  %v1731 = vpop.f32.mrb[0].mxu0
  %v1732 = vadd.f32 %v1459, %v1731
  %1733 = vmatprep.mubr.f32.mxu0 0.0
  %v1734 = vand.u32 %v1325, 4294901760
  %1735 = vmatmul.mubr.f32.gmra.mrb[0].mxu0 %v1734
  %v1736 = vpop.f32.mrb[0].mxu0
  %v1737 = vadd.f32 %v1468, %v1736
  %v1738 = vpop.f32.mrb[0].mxu0
  %v1739 = vadd.f32 %v1470, %v1738
  %1740 = vmatprep.mubr.f32.mxu0 0.0
  %v1741 = vand.u32 %v1328, 4294901760
  %1742 = vmatmul.mubr.f32.gmra.mrb[0].mxu0 %v1741
  %v1743 = vpop.f32.mrb[0].mxu0
  %v1744 = vadd.f32 %v1479, %v1743
  %v1745 = vpop.f32.mrb[0].mxu0
  %v1746 = vadd.f32 %v1481, %v1745
  %1747 = vmatprep.mubr.f32.mxu0 0.0
  %v1748 = vand.u32 %v1331, 4294901760
  %1749 = vmatmul.mubr.f32.gmra.mrb[0].mxu0 %v1748
  %v1750 = vpop.f32.mrb[0].mxu0
  %v1751 = vadd.f32 %v1490, %v1750
  %v1752 = vpop.f32.mrb[0].mxu0
  %v1753 = vadd.f32 %v1492, %v1752
  %1754 = vmatprep.mubr.f32.mxu0 0.0
  %v1755 = vand.u32 %v1334, 4294901760
  %1756 = vmatmul.mubr.f32.gmra.mrb[0].mxu0 %v1755
  %v1757 = vpop.f32.mrb[0].mxu0
  %v1758 = vadd.f32 %v1501, %v1757
  %v1759 = vpop.f32.mrb[0].mxu0
  %v1760 = vadd.f32 %v1503, %v1759
  %1761 = vmatprep.mubr.f32.mxu0 0.0
  %v1762 = vand.u32 %v1337, 4294901760
  %1763 = vmatmul.mubr.f32.gmra.mrb[0].mxu0 %v1762
  %v1764 = vpop.f32.mrb[0].mxu0
  %v1765 = vadd.f32 %v1512, %v1764
  %v1766 = vpop.f32.mrb[0].mxu0
  %v1767 = vadd.f32 %v1514, %v1766
  %1768 = vmatprep.mubr.f32.mxu0 0.0
  %v1769 = vand.u32 %v1340, 4294901760
  %1770 = vmatmul.mubr.f32.gmra.mrb[0].mxu0 %v1769
  %v1771 = vpop.f32.mrb[0].mxu0
  %v1772 = vadd.f32 %v1523, %v1771
  %v1773 = vpop.f32.mrb[0].mxu0
  %v1774 = vadd.f32 %v1525, %v1773
  %1775 = vmatprep.mubr.f32.mxu0 0.0
  %v1776 = vand.u32 %v1343, 4294901760
  %1777 = vmatmul.mubr.f32.gmra.mrb[0].mxu0 %v1776
  %v1778 = vpop.f32.mrb[0].mxu0
  %v1779 = vadd.f32 %v1534, %v1778
  %v1780 = vpop.f32.mrb[0].mxu0
  %v1781 = vadd.f32 %v1536, %v1780
  %1782 = vmatprep.mubr.f32.mxu0 0.0
  %v1783 = vand.u32 %v1346, 4294901760
  %1784 = vmatmul.mubr.f32.gmra.mrb[0].mxu0 %v1783
  %v1785 = vpop.f32.mrb[0].mxu0
  %v1786 = vadd.f32 %v1545, %v1785
  %v1787 = vpop.f32.mrb[0].mxu0
  %v1788 = vadd.f32 %v1547, %v1787
  %1789 = vmatprep.mubr.f32.mxu0 0.0
  %v1790 = vand.u32 %v1349, 4294901760
  %1791 = vmatmul.mubr.f32.gmra.mrb[0].mxu0 %v1790
  %v1792 = vpop.f32.mrb[0].mxu0
  %v1793 = vadd.f32 %v1556, %v1792
  %v1794 = vpop.f32.mrb[0].mxu0
  %v1795 = vadd.f32 %v1558, %v1794
  %1796 = vmatprep.mubr.f32.mxu0 0.0
  %v1797 = vand.u32 %v1352, 4294901760
  %1798 = vmatmul.mubr.f32.gmra.mrb[0].mxu0 %v1797
  %v1799 = vpop.f32.mrb[0].mxu0
  %v1800 = vadd.f32 %v1567, %v1799
  %v1801 = vpop.f32.mrb[0].mxu0
  %v1802 = vadd.f32 %v1569, %v1801
  %1803 = vmatprep.mubr.f32.mxu0 0.0
  %v1804 = vand.u32 %v1355, 4294901760
  %1805 = vmatmul.mubr.f32.gmra.mrb[0].mxu0 %v1804
  %v1806 = vpop.f32.mrb[0].mxu0
  %v1807 = vadd.f32 %v1578, %v1806
  %v1808 = vpop.f32.mrb[0].mxu0
  %v1809 = vadd.f32 %v1580, %v1808
  %1810 = vmatprep.mubr.f32.mxu0 0.0
  %v1811 = vand.u32 %v1358, 4294901760
  %1812 = vmatmul.mubr.f32.gmra.mrb[0].mxu0 %v1811
  %v1813 = vpop.f32.mrb[0].mxu0
  %v1814 = vadd.f32 %v1589, %v1813
  %v1815 = vpop.f32.mrb[0].mxu0
  %v1816 = vadd.f32 %v1591, %v1815
  %1817 = vmatprep.mubr.f32.mxu0 0.0
  %v1818 = vand.u32 %v1361, 4294901760
  %1819 = vmatmul.mubr.f32.gmra.mrb[0].mxu0 %v1818
  %v1820 = vpop.f32.mrb[0].mxu0
  %v1821 = vadd.f32 %v1600, %v1820
  %v1822 = vpop.f32.mrb[0].mxu0
  %v1823 = vadd.f32 %v1602, %v1822
  %1824 = vmatprep.mubr.f32.mxu0 0.0
  %v1825 = vand.u32 %v1364, 4294901760
  %1826 = vmatmul.mubr.f32.gmra.mrb[0].mxu0 %v1825
  %v1827 = vpop.f32.mrb[0].mxu0
  %v1828 = vadd.f32 %v1611, %v1827
  %v1829 = vpop.f32.mrb[0].mxu0
  %v1830 = vadd.f32 %v1613, %v1829
  %1831 = vdwg.mxu0
  %v1832 = vand.u32 %v1311, 4294901760
  %v1833 = vsub.f32 %v1311, %v1832
  %1834 = vmatprep.subr.mxu0 %v1833
  %v1835 = vand.u32 %v1310, 4294901760
  %v1836 = vsub.f32 %v1310, %v1835
  %1837 = vmatpush1.msra.mxu0 %v1836
  %v1838 = vand.u32 %v1313, 4294901760
  %v1839 = vsub.f32 %v1313, %v1838
  %1840 = vmatprep.subr.mxu0 %v1839
  %v1841 = vand.u32 %v1312, 4294901760
  %v1842 = vsub.f32 %v1312, %v1841
  %1843 = vmatpush1.msra.mxu0 %v1842
  %v1844 = vand.u32 %v1315, 4294901760
  %v1845 = vsub.f32 %v1315, %v1844
  %1846 = vmatprep.subr.mxu0 %v1845
  %v1847 = vand.u32 %v1314, 4294901760
  %v1848 = vsub.f32 %v1314, %v1847
  %1849 = vmatpush1.msra.mxu0 %v1848
  %v1850 = vand.u32 %v1317, 4294901760
  %v1851 = vsub.f32 %v1317, %v1850
  %1852 = vmatprep.subr.mxu0 %v1851
  %v1853 = vand.u32 %v1316, 4294901760
  %v1854 = vsub.f32 %v1316, %v1853
  %1855 = vmatpush1.msra.mxu0 %v1854
  %1856 = vmatprep.subr.mxu0 0.0
  %1857 = vmatpush1.msra.mxu0 0.0
  %1858 = vmatprep.subr.mxu0 0.0
  %1859 = vmatpush1.msra.mxu0 0.0
  %1860 = vmatprep.subr.mxu0 0.0
  %1861 = vmatpush1.msra.mxu0 0.0
  %1862 = vmatprep.subr.mxu0 0.0
  %1863 = vmatpush1.msra.mxu0 0.0
  %1864 = vmatprep.subr.mxu0 0.0
  %1865 = vmatpush1.msra.mxu0 0.0
  %1866 = vmatprep.subr.mxu0 0.0
  %1867 = vmatpush1.msra.mxu0 0.0
  %1868 = vmatprep.subr.mxu0 0.0
  %1869 = vmatpush1.msra.mxu0 0.0
  %1870 = vmatprep.subr.mxu0 0.0
  %1871 = vmatpush1.msra.mxu0 0.0
  %1872 = vmatprep.subr.mxu0 0.0
  %1873 = vmatpush1.msra.mxu0 0.0
  %1874 = vmatprep.subr.mxu0 0.0
  %1875 = vmatpush1.msra.mxu0 0.0
  %1876 = vmatprep.subr.mxu0 0.0
  %1877 = vmatpush1.msra.mxu0 0.0
  %1878 = vmatprep.subr.mxu0 0.0
  %1879 = vmatpush1.msra.mxu0 0.0
  %1880 = vmatprep.subr.mxu0 0.0
  %1881 = vmatpush1.msra.mxu0 0.0
  %1882 = vmatprep.subr.mxu0 0.0
  %1883 = vmatpush1.msra.mxu0 0.0
  %1884 = vmatprep.subr.mxu0 0.0
  %1885 = vmatpush1.msra.mxu0 0.0
  %1886 = vmatprep.subr.mxu0 0.0
  %1887 = vmatpush1.msra.mxu0 0.0
  %1888 = vmatprep.subr.mxu0 0.0
  %1889 = vmatpush1.msra.mxu0 0.0
  %1890 = vmatprep.subr.mxu0 0.0
  %1891 = vmatpush1.msra.mxu0 0.0
  %1892 = vmatprep.subr.mxu0 0.0
  %1893 = vmatpush1.msra.mxu0 0.0
  %1894 = vmatprep.subr.mxu0 0.0
  %1895 = vmatpush1.msra.mxu0 0.0
  %1896 = vmatprep.subr.mxu0 0.0
  %1897 = vmatpush1.msra.mxu0 0.0
  %1898 = vmatprep.subr.mxu0 0.0
  %1899 = vmatpush1.msra.mxu0 0.0
  %1900 = vmatprep.subr.mxu0 0.0
  %1901 = vmatpush1.msra.mxu0 0.0
  %1902 = vmatprep.subr.mxu0 0.0
  %1903 = vmatpush1.msra.mxu0 0.0
  %1904 = vmatprep.subr.mxu0 0.0
  %1905 = vmatpush1.msra.mxu0 0.0
  %1906 = vmatprep.subr.mxu0 0.0
  %1907 = vmatpush1.msra.mxu0 0.0
  %1908 = vmatprep.subr.mxu0 0.0
  %1909 = vmatpush1.msra.mxu0 0.0
  %1910 = vmatprep.subr.mxu0 0.0
  %1911 = vmatpush1.msra.mxu0 0.0
  %1912 = vmatprep.mubr.f32.mxu0 0.0
  %v1913 = vand.u32 %v1319, 4294901760
  %v1914 = vsub.f32 %v1319, %v1913
  %1915 = vmatmul.mubr.f32.gmra.mrb[0].mxu0 %v1914
  %v1916 = vpop.f32.mrb[0].mxu0
  %v1917 = vadd.f32 %v1723, %v1916
  %v1918 = vpop.f32.mrb[0].mxu0
  %v1919 = vadd.f32 %v1725, %v1918
  %1920 = vmatprep.mubr.f32.mxu0 0.0
  %v1921 = vand.u32 %v1322, 4294901760
  %v1922 = vsub.f32 %v1322, %v1921
  %1923 = vmatmul.mubr.f32.gmra.mrb[0].mxu0 %v1922
  %v1924 = vpop.f32.mrb[0].mxu0
  %v1925 = vadd.f32 %v1730, %v1924
  %v1926 = vpop.f32.mrb[0].mxu0
  %v1927 = vadd.f32 %v1732, %v1926
  %1928 = vmatprep.mubr.f32.mxu0 0.0
  %v1929 = vand.u32 %v1325, 4294901760
  %v1930 = vsub.f32 %v1325, %v1929
  %1931 = vmatmul.mubr.f32.gmra.mrb[0].mxu0 %v1930
  %v1932 = vpop.f32.mrb[0].mxu0
  %v1933 = vadd.f32 %v1737, %v1932
  %v1934 = vpop.f32.mrb[0].mxu0
  %v1935 = vadd.f32 %v1739, %v1934
  %1936 = vmatprep.mubr.f32.mxu0 0.0
  %v1937 = vand.u32 %v1328, 4294901760
  %v1938 = vsub.f32 %v1328, %v1937
  %1939 = vmatmul.mubr.f32.gmra.mrb[0].mxu0 %v1938
  %v1940 = vpop.f32.mrb[0].mxu0
  %v1941 = vadd.f32 %v1744, %v1940
  %v1942 = vpop.f32.mrb[0].mxu0
  %v1943 = vadd.f32 %v1746, %v1942
  %1944 = vmatprep.mubr.f32.mxu0 0.0
  %v1945 = vand.u32 %v1331, 4294901760
  %v1946 = vsub.f32 %v1331, %v1945
  %1947 = vmatmul.mubr.f32.gmra.mrb[0].mxu0 %v1946
  %v1948 = vpop.f32.mrb[0].mxu0
  %v1949 = vadd.f32 %v1751, %v1948
  %v1950 = vpop.f32.mrb[0].mxu0
  %v1951 = vadd.f32 %v1753, %v1950
  %1952 = vmatprep.mubr.f32.mxu0 0.0
  %v1953 = vand.u32 %v1334, 4294901760
  %v1954 = vsub.f32 %v1334, %v1953
  %1955 = vmatmul.mubr.f32.gmra.mrb[0].mxu0 %v1954
  %v1956 = vpop.f32.mrb[0].mxu0
  %v1957 = vadd.f32 %v1758, %v1956
  %v1958 = vpop.f32.mrb[0].mxu0
  %v1959 = vadd.f32 %v1760, %v1958
  %1960 = vmatprep.mubr.f32.mxu0 0.0
  %v1961 = vand.u32 %v1337, 4294901760
  %v1962 = vsub.f32 %v1337, %v1961
  %1963 = vmatmul.mubr.f32.gmra.mrb[0].mxu0 %v1962
  %v1964 = vpop.f32.mrb[0].mxu0
  %v1965 = vadd.f32 %v1765, %v1964
  %v1966 = vpop.f32.mrb[0].mxu0
  %v1967 = vadd.f32 %v1767, %v1966
  %1968 = vmatprep.mubr.f32.mxu0 0.0
  %v1969 = vand.u32 %v1340, 4294901760
  %v1970 = vsub.f32 %v1340, %v1969
  %1971 = vmatmul.mubr.f32.gmra.mrb[0].mxu0 %v1970
  %v1972 = vpop.f32.mrb[0].mxu0
  %v1973 = vadd.f32 %v1772, %v1972
  %v1974 = vpop.f32.mrb[0].mxu0
  %v1975 = vadd.f32 %v1774, %v1974
  %1976 = vmatprep.mubr.f32.mxu0 0.0
  %v1977 = vand.u32 %v1343, 4294901760
  %v1978 = vsub.f32 %v1343, %v1977
  %1979 = vmatmul.mubr.f32.gmra.mrb[0].mxu0 %v1978
  %v1980 = vpop.f32.mrb[0].mxu0
  %v1981 = vadd.f32 %v1779, %v1980
  %v1982 = vpop.f32.mrb[0].mxu0
  %v1983 = vadd.f32 %v1781, %v1982
  %1984 = vmatprep.mubr.f32.mxu0 0.0
  %v1985 = vand.u32 %v1346, 4294901760
  %v1986 = vsub.f32 %v1346, %v1985
  %1987 = vmatmul.mubr.f32.gmra.mrb[0].mxu0 %v1986
  %v1988 = vpop.f32.mrb[0].mxu0
  %v1989 = vadd.f32 %v1786, %v1988
  %v1990 = vpop.f32.mrb[0].mxu0
  %v1991 = vadd.f32 %v1788, %v1990
  %1992 = vmatprep.mubr.f32.mxu0 0.0
  %v1993 = vand.u32 %v1349, 4294901760
  %v1994 = vsub.f32 %v1349, %v1993
  %1995 = vmatmul.mubr.f32.gmra.mrb[0].mxu0 %v1994
  %v1996 = vpop.f32.mrb[0].mxu0
  %v1997 = vadd.f32 %v1793, %v1996
  %v1998 = vpop.f32.mrb[0].mxu0
  %v1999 = vadd.f32 %v1795, %v1998
  %2000 = vmatprep.mubr.f32.mxu0 0.0
  %v2001 = vand.u32 %v1352, 4294901760
  %v2002 = vsub.f32 %v1352, %v2001
  %2003 = vmatmul.mubr.f32.gmra.mrb[0].mxu0 %v2002
  %v2004 = vpop.f32.mrb[0].mxu0
  %v2005 = vadd.f32 %v1800, %v2004
  %v2006 = vpop.f32.mrb[0].mxu0
  %v2007 = vadd.f32 %v1802, %v2006
  %2008 = vmatprep.mubr.f32.mxu0 0.0
  %v2009 = vand.u32 %v1355, 4294901760
  %v2010 = vsub.f32 %v1355, %v2009
  %2011 = vmatmul.mubr.f32.gmra.mrb[0].mxu0 %v2010
  %v2012 = vpop.f32.mrb[0].mxu0
  %v2013 = vadd.f32 %v1807, %v2012
  %v2014 = vpop.f32.mrb[0].mxu0
  %v2015 = vadd.f32 %v1809, %v2014
  %2016 = vmatprep.mubr.f32.mxu0 0.0
  %v2017 = vand.u32 %v1358, 4294901760
  %v2018 = vsub.f32 %v1358, %v2017
  %2019 = vmatmul.mubr.f32.gmra.mrb[0].mxu0 %v2018
  %v2020 = vpop.f32.mrb[0].mxu0
  %v2021 = vadd.f32 %v1814, %v2020
  %v2022 = vpop.f32.mrb[0].mxu0
  %v2023 = vadd.f32 %v1816, %v2022
  %2024 = vmatprep.mubr.f32.mxu0 0.0
  %v2025 = vand.u32 %v1361, 4294901760
  %v2026 = vsub.f32 %v1361, %v2025
  %2027 = vmatmul.mubr.f32.gmra.mrb[0].mxu0 %v2026
  %v2028 = vpop.f32.mrb[0].mxu0
  %v2029 = vadd.f32 %v1821, %v2028
  %v2030 = vpop.f32.mrb[0].mxu0
  %v2031 = vadd.f32 %v1823, %v2030
  %2032 = vmatprep.mubr.f32.mxu0 0.0
  %v2033 = vand.u32 %v1364, 4294901760
  %v2034 = vsub.f32 %v1364, %v2033
  %2035 = vmatmul.mubr.f32.gmra.mrb[0].mxu0 %v2034
  %v2036 = vpop.f32.mrb[0].mxu0
  %v2037 = vadd.f32 %v1828, %v2036
  %v2038 = vpop.f32.mrb[0].mxu0
  %v2039 = vadd.f32 %v1830, %v2038
  %2040 = vdwg.mxu0
  %v2041 = vand.u32 %v1311, 4294901760
  %2042 = vmatprep.subr.mxu0 %v2041
  %v2043 = vand.u32 %v1310, 4294901760
  %2044 = vmatpush1.msra.mxu0 %v2043
  %v2045 = vand.u32 %v1313, 4294901760
  %2046 = vmatprep.subr.mxu0 %v2045
  %v2047 = vand.u32 %v1312, 4294901760
  %2048 = vmatpush1.msra.mxu0 %v2047
  %v2049 = vand.u32 %v1315, 4294901760
  %2050 = vmatprep.subr.mxu0 %v2049
  %v2051 = vand.u32 %v1314, 4294901760
  %2052 = vmatpush1.msra.mxu0 %v2051
  %v2053 = vand.u32 %v1317, 4294901760
  %2054 = vmatprep.subr.mxu0 %v2053
  %v2055 = vand.u32 %v1316, 4294901760
  %2056 = vmatpush1.msra.mxu0 %v2055
  %2057 = vmatprep.subr.mxu0 0.0
  %2058 = vmatpush1.msra.mxu0 0.0
  %2059 = vmatprep.subr.mxu0 0.0
  %2060 = vmatpush1.msra.mxu0 0.0
  %2061 = vmatprep.subr.mxu0 0.0
  %2062 = vmatpush1.msra.mxu0 0.0
  %2063 = vmatprep.subr.mxu0 0.0
  %2064 = vmatpush1.msra.mxu0 0.0
  %2065 = vmatprep.subr.mxu0 0.0
  %2066 = vmatpush1.msra.mxu0 0.0
  %2067 = vmatprep.subr.mxu0 0.0
  %2068 = vmatpush1.msra.mxu0 0.0
  %2069 = vmatprep.subr.mxu0 0.0
  %2070 = vmatpush1.msra.mxu0 0.0
  %2071 = vmatprep.subr.mxu0 0.0
  %2072 = vmatpush1.msra.mxu0 0.0
  %2073 = vmatprep.subr.mxu0 0.0
  %2074 = vmatpush1.msra.mxu0 0.0
  %2075 = vmatprep.subr.mxu0 0.0
  %2076 = vmatpush1.msra.mxu0 0.0
  %2077 = vmatprep.subr.mxu0 0.0
  %2078 = vmatpush1.msra.mxu0 0.0
  %2079 = vmatprep.subr.mxu0 0.0
  %2080 = vmatpush1.msra.mxu0 0.0
  %2081 = vmatprep.subr.mxu0 0.0
  %2082 = vmatpush1.msra.mxu0 0.0
  %2083 = vmatprep.subr.mxu0 0.0
  %2084 = vmatpush1.msra.mxu0 0.0
  %2085 = vmatprep.subr.mxu0 0.0
  %2086 = vmatpush1.msra.mxu0 0.0
  %2087 = vmatprep.subr.mxu0 0.0
  %2088 = vmatpush1.msra.mxu0 0.0
  %2089 = vmatprep.subr.mxu0 0.0
  %2090 = vmatpush1.msra.mxu0 0.0
  %2091 = vmatprep.subr.mxu0 0.0
  %2092 = vmatpush1.msra.mxu0 0.0
  %2093 = vmatprep.subr.mxu0 0.0
  %2094 = vmatpush1.msra.mxu0 0.0
  %2095 = vmatprep.subr.mxu0 0.0
  %2096 = vmatpush1.msra.mxu0 0.0
  %2097 = vmatprep.subr.mxu0 0.0
  %2098 = vmatpush1.msra.mxu0 0.0
  %2099 = vmatprep.subr.mxu0 0.0
  %2100 = vmatpush1.msra.mxu0 0.0
  %2101 = vmatprep.subr.mxu0 0.0
  %2102 = vmatpush1.msra.mxu0 0.0
  %2103 = vmatprep.subr.mxu0 0.0
  %2104 = vmatpush1.msra.mxu0 0.0
  %2105 = vmatprep.subr.mxu0 0.0
  %2106 = vmatpush1.msra.mxu0 0.0
  %2107 = vmatprep.subr.mxu0 0.0
  %2108 = vmatpush1.msra.mxu0 0.0
  %2109 = vmatprep.subr.mxu0 0.0
  %2110 = vmatpush1.msra.mxu0 0.0
  %2111 = vmatprep.subr.mxu0 0.0
  %2112 = vmatpush1.msra.mxu0 0.0
  %2113 = vmatprep.mubr.f32.mxu0 0.0
  %v2114 = vand.u32 %v1319, 4294901760
  %v2115 = vsub.f32 %v1319, %v2114
  %v2116 = vand.u32 %v2115, 4294901760
  %2117 = vmatmul.mubr.f32.gmra.mrb[0].mxu0 %v2116
  %v2118 = vpop.f32.mrb[0].mxu0
  %v2119 = vadd.f32 %v1917, %v2118
  %v2120 = vpop.f32.mrb[0].mxu0
  %v2121 = vadd.f32 %v1919, %v2120
  %2122 = vmatprep.mubr.f32.mxu0 0.0
  %v2123 = vand.u32 %v1322, 4294901760
  %v2124 = vsub.f32 %v1322, %v2123
  %v2125 = vand.u32 %v2124, 4294901760
  %2126 = vmatmul.mubr.f32.gmra.mrb[0].mxu0 %v2125
  %v2127 = vpop.f32.mrb[0].mxu0
  %v2128 = vadd.f32 %v1925, %v2127
  %v2129 = vpop.f32.mrb[0].mxu0
  %v2130 = vadd.f32 %v1927, %v2129
  %2131 = vmatprep.mubr.f32.mxu0 0.0
  %v2132 = vand.u32 %v1325, 4294901760
  %v2133 = vsub.f32 %v1325, %v2132
  %v2134 = vand.u32 %v2133, 4294901760
  %2135 = vmatmul.mubr.f32.gmra.mrb[0].mxu0 %v2134
  %v2136 = vpop.f32.mrb[0].mxu0
  %v2137 = vadd.f32 %v1933, %v2136
  %v2138 = vpop.f32.mrb[0].mxu0
  %v2139 = vadd.f32 %v1935, %v2138
  %2140 = vmatprep.mubr.f32.mxu0 0.0
  %v2141 = vand.u32 %v1328, 4294901760
  %v2142 = vsub.f32 %v1328, %v2141
  %v2143 = vand.u32 %v2142, 4294901760
  %2144 = vmatmul.mubr.f32.gmra.mrb[0].mxu0 %v2143
  %v2145 = vpop.f32.mrb[0].mxu0
  %v2146 = vadd.f32 %v1941, %v2145
  %v2147 = vpop.f32.mrb[0].mxu0
  %v2148 = vadd.f32 %v1943, %v2147
  %2149 = vmatprep.mubr.f32.mxu0 0.0
  %v2150 = vand.u32 %v1331, 4294901760
  %v2151 = vsub.f32 %v1331, %v2150
  %v2152 = vand.u32 %v2151, 4294901760
  %2153 = vmatmul.mubr.f32.gmra.mrb[0].mxu0 %v2152
  %v2154 = vpop.f32.mrb[0].mxu0
  %v2155 = vadd.f32 %v1949, %v2154
  %v2156 = vpop.f32.mrb[0].mxu0
  %v2157 = vadd.f32 %v1951, %v2156
  %2158 = vmatprep.mubr.f32.mxu0 0.0
  %v2159 = vand.u32 %v1334, 4294901760
  %v2160 = vsub.f32 %v1334, %v2159
  %v2161 = vand.u32 %v2160, 4294901760
  %2162 = vmatmul.mubr.f32.gmra.mrb[0].mxu0 %v2161
  %v2163 = vpop.f32.mrb[0].mxu0
  %v2164 = vadd.f32 %v1957, %v2163
  %v2165 = vpop.f32.mrb[0].mxu0
  %v2166 = vadd.f32 %v1959, %v2165
  %2167 = vmatprep.mubr.f32.mxu0 0.0
  %v2168 = vand.u32 %v1337, 4294901760
  %v2169 = vsub.f32 %v1337, %v2168
  %v2170 = vand.u32 %v2169, 4294901760
  %2171 = vmatmul.mubr.f32.gmra.mrb[0].mxu0 %v2170
  %v2172 = vpop.f32.mrb[0].mxu0
  %v2173 = vadd.f32 %v1965, %v2172
  %v2174 = vpop.f32.mrb[0].mxu0
  %v2175 = vadd.f32 %v1967, %v2174
  %2176 = vmatprep.mubr.f32.mxu0 0.0
  %v2177 = vand.u32 %v1340, 4294901760
  %v2178 = vsub.f32 %v1340, %v2177
  %v2179 = vand.u32 %v2178, 4294901760
  %2180 = vmatmul.mubr.f32.gmra.mrb[0].mxu0 %v2179
  %v2181 = vpop.f32.mrb[0].mxu0
  %v2182 = vadd.f32 %v1973, %v2181
  %v2183 = vpop.f32.mrb[0].mxu0
  %v2184 = vadd.f32 %v1975, %v2183
  %2185 = vmatprep.mubr.f32.mxu0 0.0
  %v2186 = vand.u32 %v1343, 4294901760
  %v2187 = vsub.f32 %v1343, %v2186
  %v2188 = vand.u32 %v2187, 4294901760
  %2189 = vmatmul.mubr.f32.gmra.mrb[0].mxu0 %v2188
  %v2190 = vpop.f32.mrb[0].mxu0
  %v2191 = vadd.f32 %v1981, %v2190
  %v2192 = vpop.f32.mrb[0].mxu0
  %v2193 = vadd.f32 %v1983, %v2192
  %2194 = vmatprep.mubr.f32.mxu0 0.0
  %v2195 = vand.u32 %v1346, 4294901760
  %v2196 = vsub.f32 %v1346, %v2195
  %v2197 = vand.u32 %v2196, 4294901760
  %2198 = vmatmul.mubr.f32.gmra.mrb[0].mxu0 %v2197
  %v2199 = vpop.f32.mrb[0].mxu0
  %v2200 = vadd.f32 %v1989, %v2199
  %v2201 = vpop.f32.mrb[0].mxu0
  %v2202 = vadd.f32 %v1991, %v2201
  %2203 = vmatprep.mubr.f32.mxu0 0.0
  %v2204 = vand.u32 %v1349, 4294901760
  %v2205 = vsub.f32 %v1349, %v2204
  %v2206 = vand.u32 %v2205, 4294901760
  %2207 = vmatmul.mubr.f32.gmra.mrb[0].mxu0 %v2206
  %v2208 = vpop.f32.mrb[0].mxu0
  %v2209 = vadd.f32 %v1997, %v2208
  %v2210 = vpop.f32.mrb[0].mxu0
  %v2211 = vadd.f32 %v1999, %v2210
  %2212 = vmatprep.mubr.f32.mxu0 0.0
  %v2213 = vand.u32 %v1352, 4294901760
  %v2214 = vsub.f32 %v1352, %v2213
  %v2215 = vand.u32 %v2214, 4294901760
  %2216 = vmatmul.mubr.f32.gmra.mrb[0].mxu0 %v2215
  %v2217 = vpop.f32.mrb[0].mxu0
  %v2218 = vadd.f32 %v2005, %v2217
  %v2219 = vpop.f32.mrb[0].mxu0
  %v2220 = vadd.f32 %v2007, %v2219
  %2221 = vmatprep.mubr.f32.mxu0 0.0
  %v2222 = vand.u32 %v1355, 4294901760
  %v2223 = vsub.f32 %v1355, %v2222
  %v2224 = vand.u32 %v2223, 4294901760
  %2225 = vmatmul.mubr.f32.gmra.mrb[0].mxu0 %v2224
  %v2226 = vpop.f32.mrb[0].mxu0
  %v2227 = vadd.f32 %v2013, %v2226
  %v2228 = vpop.f32.mrb[0].mxu0
  %v2229 = vadd.f32 %v2015, %v2228
  %2230 = vmatprep.mubr.f32.mxu0 0.0
  %v2231 = vand.u32 %v1358, 4294901760
  %v2232 = vsub.f32 %v1358, %v2231
  %v2233 = vand.u32 %v2232, 4294901760
  %2234 = vmatmul.mubr.f32.gmra.mrb[0].mxu0 %v2233
  %v2235 = vpop.f32.mrb[0].mxu0
  %v2236 = vadd.f32 %v2021, %v2235
  %v2237 = vpop.f32.mrb[0].mxu0
  %v2238 = vadd.f32 %v2023, %v2237
  %2239 = vmatprep.mubr.f32.mxu0 0.0
  %v2240 = vand.u32 %v1361, 4294901760
  %v2241 = vsub.f32 %v1361, %v2240
  %v2242 = vand.u32 %v2241, 4294901760
  %2243 = vmatmul.mubr.f32.gmra.mrb[0].mxu0 %v2242
  %v2244 = vpop.f32.mrb[0].mxu0
  %v2245 = vadd.f32 %v2029, %v2244
  %v2246 = vpop.f32.mrb[0].mxu0
  %v2247 = vadd.f32 %v2031, %v2246
  %2248 = vmatprep.mubr.f32.mxu0 0.0
  %v2249 = vand.u32 %v1364, 4294901760
  %v2250 = vsub.f32 %v1364, %v2249
  %v2251 = vand.u32 %v2250, 4294901760
  %2252 = vmatmul.mubr.f32.gmra.mrb[0].mxu0 %v2251
  %v2253 = vpop.f32.mrb[0].mxu0
  %v2254 = vadd.f32 %v2037, %v2253
  %v2255 = vpop.f32.mrb[0].mxu0
  %v2256 = vadd.f32 %v2039, %v2255
  %2257 = vdwg.mxu0
  %v2258 = vand.u32 %v1311, 4294901760
  %v2259 = vsub.f32 %v1311, %v2258
  %v2260 = vand.u32 %v2259, 4294901760
  %2261 = vmatprep.subr.mxu0 %v2260
  %v2262 = vand.u32 %v1310, 4294901760
  %v2263 = vsub.f32 %v1310, %v2262
  %v2264 = vand.u32 %v2263, 4294901760
  %2265 = vmatpush1.msra.mxu0 %v2264
  %v2266 = vand.u32 %v1313, 4294901760
  %v2267 = vsub.f32 %v1313, %v2266
  %v2268 = vand.u32 %v2267, 4294901760
  %2269 = vmatprep.subr.mxu0 %v2268
  %v2270 = vand.u32 %v1312, 4294901760
  %v2271 = vsub.f32 %v1312, %v2270
  %v2272 = vand.u32 %v2271, 4294901760
  %2273 = vmatpush1.msra.mxu0 %v2272
  %v2274 = vand.u32 %v1315, 4294901760
  %v2275 = vsub.f32 %v1315, %v2274
  %v2276 = vand.u32 %v2275, 4294901760
  %2277 = vmatprep.subr.mxu0 %v2276
  %v2278 = vand.u32 %v1314, 4294901760
  %v2279 = vsub.f32 %v1314, %v2278
  %v2280 = vand.u32 %v2279, 4294901760
  %2281 = vmatpush1.msra.mxu0 %v2280
  %v2282 = vand.u32 %v1317, 4294901760
  %v2283 = vsub.f32 %v1317, %v2282
  %v2284 = vand.u32 %v2283, 4294901760
  %2285 = vmatprep.subr.mxu0 %v2284
  %v2286 = vand.u32 %v1316, 4294901760
  %v2287 = vsub.f32 %v1316, %v2286
  %v2288 = vand.u32 %v2287, 4294901760
  %2289 = vmatpush1.msra.mxu0 %v2288
  %2290 = vmatprep.subr.mxu0 0.0
  %2291 = vmatpush1.msra.mxu0 0.0
  %2292 = vmatprep.subr.mxu0 0.0
  %2293 = vmatpush1.msra.mxu0 0.0
  %2294 = vmatprep.subr.mxu0 0.0
  %2295 = vmatpush1.msra.mxu0 0.0
  %2296 = vmatprep.subr.mxu0 0.0
  %2297 = vmatpush1.msra.mxu0 0.0
  %2298 = vmatprep.subr.mxu0 0.0
  %2299 = vmatpush1.msra.mxu0 0.0
  %2300 = vmatprep.subr.mxu0 0.0
  %2301 = vmatpush1.msra.mxu0 0.0
  %2302 = vmatprep.subr.mxu0 0.0
  %2303 = vmatpush1.msra.mxu0 0.0
  %2304 = vmatprep.subr.mxu0 0.0
  %2305 = vmatpush1.msra.mxu0 0.0
  %2306 = vmatprep.subr.mxu0 0.0
  %2307 = vmatpush1.msra.mxu0 0.0
  %2308 = vmatprep.subr.mxu0 0.0
  %2309 = vmatpush1.msra.mxu0 0.0
  %2310 = vmatprep.subr.mxu0 0.0
  %2311 = vmatpush1.msra.mxu0 0.0
  %2312 = vmatprep.subr.mxu0 0.0
  %2313 = vmatpush1.msra.mxu0 0.0
  %2314 = vmatprep.subr.mxu0 0.0
  %2315 = vmatpush1.msra.mxu0 0.0
  %2316 = vmatprep.subr.mxu0 0.0
  %2317 = vmatpush1.msra.mxu0 0.0
  %2318 = vmatprep.subr.mxu0 0.0
  %2319 = vmatpush1.msra.mxu0 0.0
  %2320 = vmatprep.subr.mxu0 0.0
  %2321 = vmatpush1.msra.mxu0 0.0
  %2322 = vmatprep.subr.mxu0 0.0
  %2323 = vmatpush1.msra.mxu0 0.0
  %2324 = vmatprep.subr.mxu0 0.0
  %2325 = vmatpush1.msra.mxu0 0.0
  %2326 = vmatprep.subr.mxu0 0.0
  %2327 = vmatpush1.msra.mxu0 0.0
  %2328 = vmatprep.subr.mxu0 0.0
  %2329 = vmatpush1.msra.mxu0 0.0
  %2330 = vmatprep.subr.mxu0 0.0
  %2331 = vmatpush1.msra.mxu0 0.0
  %2332 = vmatprep.subr.mxu0 0.0
  %2333 = vmatpush1.msra.mxu0 0.0
  %2334 = vmatprep.subr.mxu0 0.0
  %2335 = vmatpush1.msra.mxu0 0.0
  %2336 = vmatprep.subr.mxu0 0.0
  %2337 = vmatpush1.msra.mxu0 0.0
  %2338 = vmatprep.subr.mxu0 0.0
  %2339 = vmatpush1.msra.mxu0 0.0
  %2340 = vmatprep.subr.mxu0 0.0
  %2341 = vmatpush1.msra.mxu0 0.0
  %2342 = vmatprep.subr.mxu0 0.0
  %2343 = vmatpush1.msra.mxu0 0.0
  %2344 = vmatprep.subr.mxu0 0.0
  %2345 = vmatpush1.msra.mxu0 0.0
  %2346 = vmatprep.mubr.f32.mxu0 0.0
  %v2347 = vand.u32 %v1319, 4294901760
  %2348 = vmatmul.mubr.f32.gmra.mrb[0].mxu0 %v2347
  %v2349 = vpop.f32.mrb[0].mxu0
  %v2350 = vadd.f32 %v2119, %v2349
  %v2351 = vpop.f32.mrb[0].mxu0
  %v2352 = vadd.f32 %v2121, %v2351
  %2353 = vmatprep.mubr.f32.mxu0 0.0
  %v2354 = vand.u32 %v1322, 4294901760
  %2355 = vmatmul.mubr.f32.gmra.mrb[0].mxu0 %v2354
  %v2356 = vpop.f32.mrb[0].mxu0
  %v2357 = vadd.f32 %v2128, %v2356
  %v2358 = vpop.f32.mrb[0].mxu0
  %v2359 = vadd.f32 %v2130, %v2358
  %2360 = vmatprep.mubr.f32.mxu0 0.0
  %v2361 = vand.u32 %v1325, 4294901760
  %2362 = vmatmul.mubr.f32.gmra.mrb[0].mxu0 %v2361
  %v2363 = vpop.f32.mrb[0].mxu0
  %v2364 = vadd.f32 %v2137, %v2363
  %v2365 = vpop.f32.mrb[0].mxu0
  %v2366 = vadd.f32 %v2139, %v2365
  %2367 = vmatprep.mubr.f32.mxu0 0.0
  %v2368 = vand.u32 %v1328, 4294901760
  %2369 = vmatmul.mubr.f32.gmra.mrb[0].mxu0 %v2368
  %v2370 = vpop.f32.mrb[0].mxu0
  %v2371 = vadd.f32 %v2146, %v2370
  %v2372 = vpop.f32.mrb[0].mxu0
  %v2373 = vadd.f32 %v2148, %v2372
  %2374 = vmatprep.mubr.f32.mxu0 0.0
  %v2375 = vand.u32 %v1331, 4294901760
  %2376 = vmatmul.mubr.f32.gmra.mrb[0].mxu0 %v2375
  %v2377 = vpop.f32.mrb[0].mxu0
  %v2378 = vadd.f32 %v2155, %v2377
  %v2379 = vpop.f32.mrb[0].mxu0
  %v2380 = vadd.f32 %v2157, %v2379
  %2381 = vmatprep.mubr.f32.mxu0 0.0
  %v2382 = vand.u32 %v1334, 4294901760
  %2383 = vmatmul.mubr.f32.gmra.mrb[0].mxu0 %v2382
  %v2384 = vpop.f32.mrb[0].mxu0
  %v2385 = vadd.f32 %v2164, %v2384
  %v2386 = vpop.f32.mrb[0].mxu0
  %v2387 = vadd.f32 %v2166, %v2386
  %2388 = vmatprep.mubr.f32.mxu0 0.0
  %v2389 = vand.u32 %v1337, 4294901760
  %2390 = vmatmul.mubr.f32.gmra.mrb[0].mxu0 %v2389
  %v2391 = vpop.f32.mrb[0].mxu0
  %v2392 = vadd.f32 %v2173, %v2391
  %v2393 = vpop.f32.mrb[0].mxu0
  %v2394 = vadd.f32 %v2175, %v2393
  %2395 = vmatprep.mubr.f32.mxu0 0.0
  %v2396 = vand.u32 %v1340, 4294901760
  %2397 = vmatmul.mubr.f32.gmra.mrb[0].mxu0 %v2396
  %v2398 = vpop.f32.mrb[0].mxu0
  %v2399 = vadd.f32 %v2182, %v2398
  %v2400 = vpop.f32.mrb[0].mxu0
  %v2401 = vadd.f32 %v2184, %v2400
  %2402 = vmatprep.mubr.f32.mxu0 0.0
  %v2403 = vand.u32 %v1343, 4294901760
  %2404 = vmatmul.mubr.f32.gmra.mrb[0].mxu0 %v2403
  %v2405 = vpop.f32.mrb[0].mxu0
  %v2406 = vadd.f32 %v2191, %v2405
  %v2407 = vpop.f32.mrb[0].mxu0
  %v2408 = vadd.f32 %v2193, %v2407
  %2409 = vmatprep.mubr.f32.mxu0 0.0
  %v2410 = vand.u32 %v1346, 4294901760
  %2411 = vmatmul.mubr.f32.gmra.mrb[0].mxu0 %v2410
  %v2412 = vpop.f32.mrb[0].mxu0
  %v2413 = vadd.f32 %v2200, %v2412
  %v2414 = vpop.f32.mrb[0].mxu0
  %v2415 = vadd.f32 %v2202, %v2414
  %2416 = vmatprep.mubr.f32.mxu0 0.0
  %v2417 = vand.u32 %v1349, 4294901760
  %2418 = vmatmul.mubr.f32.gmra.mrb[0].mxu0 %v2417
  %v2419 = vpop.f32.mrb[0].mxu0
  %v2420 = vadd.f32 %v2209, %v2419
  %v2421 = vpop.f32.mrb[0].mxu0
  %v2422 = vadd.f32 %v2211, %v2421
  %2423 = vmatprep.mubr.f32.mxu0 0.0
  %v2424 = vand.u32 %v1352, 4294901760
  %2425 = vmatmul.mubr.f32.gmra.mrb[0].mxu0 %v2424
  %v2426 = vpop.f32.mrb[0].mxu0
  %v2427 = vadd.f32 %v2218, %v2426
  %v2428 = vpop.f32.mrb[0].mxu0
  %v2429 = vadd.f32 %v2220, %v2428
  %2430 = vmatprep.mubr.f32.mxu0 0.0
  %v2431 = vand.u32 %v1355, 4294901760
  %2432 = vmatmul.mubr.f32.gmra.mrb[0].mxu0 %v2431
  %v2433 = vpop.f32.mrb[0].mxu0
  %v2434 = vadd.f32 %v2227, %v2433
  %v2435 = vpop.f32.mrb[0].mxu0
  %v2436 = vadd.f32 %v2229, %v2435
  %2437 = vmatprep.mubr.f32.mxu0 0.0
  %v2438 = vand.u32 %v1358, 4294901760
  %2439 = vmatmul.mubr.f32.gmra.mrb[0].mxu0 %v2438
  %v2440 = vpop.f32.mrb[0].mxu0
  %v2441 = vadd.f32 %v2236, %v2440
  %v2442 = vpop.f32.mrb[0].mxu0
  %v2443 = vadd.f32 %v2238, %v2442
  %2444 = vmatprep.mubr.f32.mxu0 0.0
  %v2445 = vand.u32 %v1361, 4294901760
  %2446 = vmatmul.mubr.f32.gmra.mrb[0].mxu0 %v2445
  %v2447 = vpop.f32.mrb[0].mxu0
  %v2448 = vadd.f32 %v2245, %v2447
  %v2449 = vpop.f32.mrb[0].mxu0
  %v2450 = vadd.f32 %v2247, %v2449
  %2451 = vmatprep.mubr.f32.mxu0 0.0
  %v2452 = vand.u32 %v1364, 4294901760
  %2453 = vmatmul.mubr.f32.gmra.mrb[0].mxu0 %v2452
  %v2454 = vpop.f32.mrb[0].mxu0
  %v2455 = vadd.f32 %v2254, %v2454
  %v2456 = vpop.f32.mrb[0].mxu0
  %v2457 = vadd.f32 %v2256, %v2456
  %2458 = vdwg.mxu0
  %v2459 = vand.u32 %v1311, 4294901760
  %2460 = vmatprep.subr.mxu0 %v2459
  %v2461 = vand.u32 %v1310, 4294901760
  %2462 = vmatpush1.msra.mxu0 %v2461
  %v2463 = vand.u32 %v1313, 4294901760
  %2464 = vmatprep.subr.mxu0 %v2463
  %v2465 = vand.u32 %v1312, 4294901760
  %2466 = vmatpush1.msra.mxu0 %v2465
  %v2467 = vand.u32 %v1315, 4294901760
  %2468 = vmatprep.subr.mxu0 %v2467
  %v2469 = vand.u32 %v1314, 4294901760
  %2470 = vmatpush1.msra.mxu0 %v2469
  %v2471 = vand.u32 %v1317, 4294901760
  %2472 = vmatprep.subr.mxu0 %v2471
  %v2473 = vand.u32 %v1316, 4294901760
  %2474 = vmatpush1.msra.mxu0 %v2473
  %2475 = vmatprep.subr.mxu0 0.0
  %2476 = vmatpush1.msra.mxu0 0.0
  %2477 = vmatprep.subr.mxu0 0.0
  %2478 = vmatpush1.msra.mxu0 0.0
  %2479 = vmatprep.subr.mxu0 0.0
  %2480 = vmatpush1.msra.mxu0 0.0
  %2481 = vmatprep.subr.mxu0 0.0
  %2482 = vmatpush1.msra.mxu0 0.0
  %2483 = vmatprep.subr.mxu0 0.0
  %2484 = vmatpush1.msra.mxu0 0.0
  %2485 = vmatprep.subr.mxu0 0.0
  %2486 = vmatpush1.msra.mxu0 0.0
  %2487 = vmatprep.subr.mxu0 0.0
  %2488 = vmatpush1.msra.mxu0 0.0
  %2489 = vmatprep.subr.mxu0 0.0
  %2490 = vmatpush1.msra.mxu0 0.0
  %2491 = vmatprep.subr.mxu0 0.0
  %2492 = vmatpush1.msra.mxu0 0.0
  %2493 = vmatprep.subr.mxu0 0.0
  %2494 = vmatpush1.msra.mxu0 0.0
  %2495 = vmatprep.subr.mxu0 0.0
  %2496 = vmatpush1.msra.mxu0 0.0
  %2497 = vmatprep.subr.mxu0 0.0
  %2498 = vmatpush1.msra.mxu0 0.0
  %2499 = vmatprep.subr.mxu0 0.0
  %2500 = vmatpush1.msra.mxu0 0.0
  %2501 = vmatprep.subr.mxu0 0.0
  %2502 = vmatpush1.msra.mxu0 0.0
  %2503 = vmatprep.subr.mxu0 0.0
  %2504 = vmatpush1.msra.mxu0 0.0
  %2505 = vmatprep.subr.mxu0 0.0
  %2506 = vmatpush1.msra.mxu0 0.0
  %2507 = vmatprep.subr.mxu0 0.0
  %2508 = vmatpush1.msra.mxu0 0.0
  %2509 = vmatprep.subr.mxu0 0.0
  %2510 = vmatpush1.msra.mxu0 0.0
  %2511 = vmatprep.subr.mxu0 0.0
  %2512 = vmatpush1.msra.mxu0 0.0
  %2513 = vmatprep.subr.mxu0 0.0
  %2514 = vmatpush1.msra.mxu0 0.0
  %2515 = vmatprep.subr.mxu0 0.0
  %2516 = vmatpush1.msra.mxu0 0.0
  %2517 = vmatprep.subr.mxu0 0.0
  %2518 = vmatpush1.msra.mxu0 0.0
  %2519 = vmatprep.subr.mxu0 0.0
  %2520 = vmatpush1.msra.mxu0 0.0
  %2521 = vmatprep.subr.mxu0 0.0
  %2522 = vmatpush1.msra.mxu0 0.0
  %2523 = vmatprep.subr.mxu0 0.0
  %2524 = vmatpush1.msra.mxu0 0.0
  %2525 = vmatprep.subr.mxu0 0.0
  %2526 = vmatpush1.msra.mxu0 0.0
  %2527 = vmatprep.subr.mxu0 0.0
  %2528 = vmatpush1.msra.mxu0 0.0
  %2529 = vmatprep.subr.mxu0 0.0
  %2530 = vmatpush1.msra.mxu0 0.0
  %2531 = vmatprep.mubr.f32.mxu0 0.0
  %v2532 = vand.u32 %v1319, 4294901760
  %2533 = vmatmul.mubr.f32.gmra.mrb[0].mxu0 %v2532
  %v2534 = vpop.f32.mrb[0].mxu0
  %v2535 = vadd.f32 %v2350, %v2534
  %v2536 = vpop.f32.mrb[0].mxu0
  %v2537 = vadd.f32 %v2352, %v2536
  %2538 = vmatprep.mubr.f32.mxu0 0.0
  %v2539 = vand.u32 %v1322, 4294901760
  %2540 = vmatmul.mubr.f32.gmra.mrb[0].mxu0 %v2539
  %v2541 = vpop.f32.mrb[0].mxu0
  %v2542 = vadd.f32 %v2357, %v2541
  %v2543 = vpop.f32.mrb[0].mxu0
  %v2544 = vadd.f32 %v2359, %v2543
  %2545 = vmatprep.mubr.f32.mxu0 0.0
  %v2546 = vand.u32 %v1325, 4294901760
  %2547 = vmatmul.mubr.f32.gmra.mrb[0].mxu0 %v2546
  %v2548 = vpop.f32.mrb[0].mxu0
  %v2549 = vadd.f32 %v2364, %v2548
  %v2550 = vpop.f32.mrb[0].mxu0
  %v2551 = vadd.f32 %v2366, %v2550
  %2552 = vmatprep.mubr.f32.mxu0 0.0
  %v2553 = vand.u32 %v1328, 4294901760
  %2554 = vmatmul.mubr.f32.gmra.mrb[0].mxu0 %v2553
  %v2555 = vpop.f32.mrb[0].mxu0
  %v2556 = vadd.f32 %v2371, %v2555
  %v2557 = vpop.f32.mrb[0].mxu0
  %v2558 = vadd.f32 %v2373, %v2557
  %2559 = vmatprep.mubr.f32.mxu0 0.0
  %v2560 = vand.u32 %v1331, 4294901760
  %2561 = vmatmul.mubr.f32.gmra.mrb[0].mxu0 %v2560
  %v2562 = vpop.f32.mrb[0].mxu0
  %v2563 = vadd.f32 %v2378, %v2562
  %v2564 = vpop.f32.mrb[0].mxu0
  %v2565 = vadd.f32 %v2380, %v2564
  %2566 = vmatprep.mubr.f32.mxu0 0.0
  %v2567 = vand.u32 %v1334, 4294901760
  %2568 = vmatmul.mubr.f32.gmra.mrb[0].mxu0 %v2567
  %v2569 = vpop.f32.mrb[0].mxu0
  %v2570 = vadd.f32 %v2385, %v2569
  %v2571 = vpop.f32.mrb[0].mxu0
  %v2572 = vadd.f32 %v2387, %v2571
  %2573 = vmatprep.mubr.f32.mxu0 0.0
  %v2574 = vand.u32 %v1337, 4294901760
  %2575 = vmatmul.mubr.f32.gmra.mrb[0].mxu0 %v2574
  %v2576 = vpop.f32.mrb[0].mxu0
  %v2577 = vadd.f32 %v2392, %v2576
  %v2578 = vpop.f32.mrb[0].mxu0
  %v2579 = vadd.f32 %v2394, %v2578
  %2580 = vmatprep.mubr.f32.mxu0 0.0
  %v2581 = vand.u32 %v1340, 4294901760
  %2582 = vmatmul.mubr.f32.gmra.mrb[0].mxu0 %v2581
  %v2583 = vpop.f32.mrb[0].mxu0
  %v2584 = vadd.f32 %v2399, %v2583
  %v2585 = vpop.f32.mrb[0].mxu0
  %v2586 = vadd.f32 %v2401, %v2585
  %2587 = vmatprep.mubr.f32.mxu0 0.0
  %v2588 = vand.u32 %v1343, 4294901760
  %2589 = vmatmul.mubr.f32.gmra.mrb[0].mxu0 %v2588
  %v2590 = vpop.f32.mrb[0].mxu0
  %v2591 = vadd.f32 %v2406, %v2590
  %v2592 = vpop.f32.mrb[0].mxu0
  %v2593 = vadd.f32 %v2408, %v2592
  %2594 = vmatprep.mubr.f32.mxu0 0.0
  %v2595 = vand.u32 %v1346, 4294901760
  %2596 = vmatmul.mubr.f32.gmra.mrb[0].mxu0 %v2595
  %v2597 = vpop.f32.mrb[0].mxu0
  %v2598 = vadd.f32 %v2413, %v2597
  %v2599 = vpop.f32.mrb[0].mxu0
  %v2600 = vadd.f32 %v2415, %v2599
  %2601 = vmatprep.mubr.f32.mxu0 0.0
  %v2602 = vand.u32 %v1349, 4294901760
  %2603 = vmatmul.mubr.f32.gmra.mrb[0].mxu0 %v2602
  %v2604 = vpop.f32.mrb[0].mxu0
  %v2605 = vadd.f32 %v2420, %v2604
  %v2606 = vpop.f32.mrb[0].mxu0
  %v2607 = vadd.f32 %v2422, %v2606
  %2608 = vmatprep.mubr.f32.mxu0 0.0
  %v2609 = vand.u32 %v1352, 4294901760
  %2610 = vmatmul.mubr.f32.gmra.mrb[0].mxu0 %v2609
  %v2611 = vpop.f32.mrb[0].mxu0
  %v2612 = vadd.f32 %v2427, %v2611
  %v2613 = vpop.f32.mrb[0].mxu0
  %v2614 = vadd.f32 %v2429, %v2613
  %2615 = vmatprep.mubr.f32.mxu0 0.0
  %v2616 = vand.u32 %v1355, 4294901760
  %2617 = vmatmul.mubr.f32.gmra.mrb[0].mxu0 %v2616
  %v2618 = vpop.f32.mrb[0].mxu0
  %v2619 = vadd.f32 %v2434, %v2618
  %v2620 = vpop.f32.mrb[0].mxu0
  %v2621 = vadd.f32 %v2436, %v2620
  %2622 = vmatprep.mubr.f32.mxu0 0.0
  %v2623 = vand.u32 %v1358, 4294901760
  %2624 = vmatmul.mubr.f32.gmra.mrb[0].mxu0 %v2623
  %v2625 = vpop.f32.mrb[0].mxu0
  %v2626 = vadd.f32 %v2441, %v2625
  %v2627 = vpop.f32.mrb[0].mxu0
  %v2628 = vadd.f32 %v2443, %v2627
  %2629 = vmatprep.mubr.f32.mxu0 0.0
  %v2630 = vand.u32 %v1361, 4294901760
  %2631 = vmatmul.mubr.f32.gmra.mrb[0].mxu0 %v2630
  %v2632 = vpop.f32.mrb[0].mxu0
  %v2633 = vadd.f32 %v2448, %v2632
  %v2634 = vpop.f32.mrb[0].mxu0
  %v2635 = vadd.f32 %v2450, %v2634
  %2636 = vmatprep.mubr.f32.mxu0 0.0
  %v2637 = vand.u32 %v1364, 4294901760
  %2638 = vmatmul.mubr.f32.gmra.mrb[0].mxu0 %v2637
  %v2639 = vpop.f32.mrb[0].mxu0
  %v2640 = vadd.f32 %v2455, %v2639
  %v2641 = vpop.f32.mrb[0].mxu0
  %v2642 = vadd.f32 %v2457, %v2641
  %2643 = vdwg.mxu0
  %v2644 = vld [vmem:[%s5] sm:$0x3]
  %v2646 = vlaneseq
  %v2647 = vshrl.u32 %v2646, 7
  %v2648 = vsub.s32 0, %v2647
  %v2649 = vrot.slane %v2644, %v2648
  %v2650 = vlaneseq
  %v2651 = vshrl.u32 %v2650, 7
  %v2652 = vsub.s32 1, %v2651
  %v2653 = vrot.slane %v2644, %v2652
  %v2656 = vmul.f32 %v2535, %v2649
  %v2657 = vmul.f32 %v2537, %v2653
  %v2658 = vmul.f32 %v2542, %v2649
  %v2659 = vmul.f32 %v2544, %v2653
  %v2660 = vmul.f32 %v2549, %v2649
  %v2661 = vmul.f32 %v2551, %v2653
  %v2662 = vmul.f32 %v2556, %v2649
  %v2663 = vmul.f32 %v2558, %v2653
  %v2664 = vmul.f32 %v2563, %v2649
  %v2665 = vmul.f32 %v2565, %v2653
  %v2666 = vmul.f32 %v2570, %v2649
  %v2667 = vmul.f32 %v2572, %v2653
  %v2668 = vmul.f32 %v2577, %v2649
  %v2669 = vmul.f32 %v2579, %v2653
  %v2670 = vmul.f32 %v2584, %v2649
  %v2671 = vmul.f32 %v2586, %v2653
  %v2672 = vmul.f32 %v2591, %v2649
  %v2673 = vmul.f32 %v2593, %v2653
  %v2674 = vmul.f32 %v2598, %v2649
  %v2675 = vmul.f32 %v2600, %v2653
  %v2676 = vmul.f32 %v2605, %v2649
  %v2677 = vmul.f32 %v2607, %v2653
  %v2678 = vmul.f32 %v2612, %v2649
  %v2679 = vmul.f32 %v2614, %v2653
  %v2680 = vmul.f32 %v2619, %v2649
  %v2681 = vmul.f32 %v2621, %v2653
  %v2682 = vmul.f32 %v2626, %v2649
  %v2683 = vmul.f32 %v2628, %v2653
  %v2684 = vmul.f32 %v2633, %v2649
  %v2685 = vmul.f32 %v2635, %v2653
  %v2686 = vmul.f32 %v2640, %v2649
  %v2687 = vmul.f32 %v2642, %v2653
  %v2688 = vld [vmem:[%s6] sm:$0x3]
  %v2690 = vlaneseq
  %v2691 = vshrl.u32 %v2690, 7
  %v2692 = vsub.s32 0, %v2691
  %v2693 = vrot.slane %v2688, %v2692
  %v2694 = vlaneseq
  %v2695 = vshrl.u32 %v2694, 7
  %v2696 = vsub.s32 1, %v2695
  %v2697 = vrot.slane %v2688, %v2696
  %v2700 = vadd.f32 %v2656, %v2693
  %v2701 = vadd.f32 %v2657, %v2697
  %v2702 = vadd.f32 %v2658, %v2693
  %v2703 = vadd.f32 %v2659, %v2697
  %v2704 = vadd.f32 %v2660, %v2693
  %v2705 = vadd.f32 %v2661, %v2697
  %v2706 = vadd.f32 %v2662, %v2693
  %v2707 = vadd.f32 %v2663, %v2697
  %v2708 = vadd.f32 %v2664, %v2693
  %v2709 = vadd.f32 %v2665, %v2697
  %v2710 = vadd.f32 %v2666, %v2693
  %v2711 = vadd.f32 %v2667, %v2697
  %v2712 = vadd.f32 %v2668, %v2693
  %v2713 = vadd.f32 %v2669, %v2697
  %v2714 = vadd.f32 %v2670, %v2693
  %v2715 = vadd.f32 %v2671, %v2697
  %v2716 = vadd.f32 %v2672, %v2693
  %v2717 = vadd.f32 %v2673, %v2697
  %v2718 = vadd.f32 %v2674, %v2693
  %v2719 = vadd.f32 %v2675, %v2697
  %v2720 = vadd.f32 %v2676, %v2693
  %v2721 = vadd.f32 %v2677, %v2697
  %v2722 = vadd.f32 %v2678, %v2693
  %v2723 = vadd.f32 %v2679, %v2697
  %v2724 = vadd.f32 %v2680, %v2693
  %v2725 = vadd.f32 %v2681, %v2697
  %v2726 = vadd.f32 %v2682, %v2693
  %v2727 = vadd.f32 %v2683, %v2697
  %v2728 = vadd.f32 %v2684, %v2693
  %v2729 = vadd.f32 %v2685, %v2697
  %v2730 = vadd.f32 %v2686, %v2693
  %v2731 = vadd.f32 %v2687, %v2697
  %v2732 = vmax.f32 %v2700, 0.0
  %v2733 = vmax.f32 %v2701, 0.0
  %v2734 = vmax.f32 %v2702, 0.0
  %v2735 = vmax.f32 %v2703, 0.0
  %v2736 = vmax.f32 %v2704, 0.0
  %v2737 = vmax.f32 %v2705, 0.0
  %v2738 = vmax.f32 %v2706, 0.0
  %v2739 = vmax.f32 %v2707, 0.0
  %v2740 = vmax.f32 %v2708, 0.0
  %v2741 = vmax.f32 %v2709, 0.0
  %v2742 = vmax.f32 %v2710, 0.0
  %v2743 = vmax.f32 %v2711, 0.0
  %v2744 = vmax.f32 %v2712, 0.0
  %v2745 = vmax.f32 %v2713, 0.0
  %v2746 = vmax.f32 %v2714, 0.0
  %v2747 = vmax.f32 %v2715, 0.0
  %v2748 = vmax.f32 %v2716, 0.0
  %v2749 = vmax.f32 %v2717, 0.0
  %v2750 = vmax.f32 %v2718, 0.0
  %v2751 = vmax.f32 %v2719, 0.0
  %v2752 = vmax.f32 %v2720, 0.0
  %v2753 = vmax.f32 %v2721, 0.0
  %v2754 = vmax.f32 %v2722, 0.0
  %v2755 = vmax.f32 %v2723, 0.0
  %v2756 = vmax.f32 %v2724, 0.0
  %v2757 = vmax.f32 %v2725, 0.0
  %v2758 = vmax.f32 %v2726, 0.0
  %v2759 = vmax.f32 %v2727, 0.0
  %v2760 = vmax.f32 %v2728, 0.0
  %v2761 = vmax.f32 %v2729, 0.0
  %v2762 = vmax.f32 %v2730, 0.0
  %v2763 = vmax.f32 %v2731, 0.0
  %2764 = vst [vmem:[%s8] sm:$0xff] %v2732
  %2765 = vst.msk [vmem:[%s8 + $0x8] sm:$0xff] %vm1293, %v2733
  %2766 = vst [vmem:[%s8 + $0x10] sm:$0xff] %v2734
  %2767 = vst.msk [vmem:[%s8 + $0x18] sm:$0xff] %vm1293, %v2735
  %2768 = vst [vmem:[%s8 + $0x20] sm:$0xff] %v2736
  %2769 = vst.msk [vmem:[%s8 + $0x28] sm:$0xff] %vm1293, %v2737
  %2770 = vst [vmem:[%s8 + $0x30] sm:$0xff] %v2738
  %2771 = vst.msk [vmem:[%s8 + $0x38] sm:$0xff] %vm1293, %v2739
  %2772 = vst [vmem:[%s8 + $0x40] sm:$0xff] %v2740
  %2773 = vst.msk [vmem:[%s8 + $0x48] sm:$0xff] %vm1293, %v2741
  %2774 = vst [vmem:[%s8 + $0x50] sm:$0xff] %v2742
  %2775 = vst.msk [vmem:[%s8 + $0x58] sm:$0xff] %vm1293, %v2743
  %2776 = vst [vmem:[%s8 + $0x60] sm:$0xff] %v2744
  %2777 = vst.msk [vmem:[%s8 + $0x68] sm:$0xff] %vm1293, %v2745
  %2778 = vst [vmem:[%s8 + $0x70] sm:$0xff] %v2746
  %2779 = vst.msk [vmem:[%s8 + $0x78] sm:$0xff] %vm1293, %v2747
  %2780 = vst [vmem:[%s8 + $0x80] sm:$0xff] %v2748
  %2781 = vst.msk [vmem:[%s8 + $0x88] sm:$0xff] %vm1293, %v2749
  %2782 = vst [vmem:[%s8 + $0x90] sm:$0xff] %v2750
  %2783 = vst.msk [vmem:[%s8 + $0x98] sm:$0xff] %vm1293, %v2751
  %2784 = vst [vmem:[%s8 + $0xa0] sm:$0xff] %v2752
  %2785 = vst.msk [vmem:[%s8 + $0xa8] sm:$0xff] %vm1293, %v2753
  %2786 = vst [vmem:[%s8 + $0xb0] sm:$0xff] %v2754
  %2787 = vst.msk [vmem:[%s8 + $0xb8] sm:$0xff] %vm1293, %v2755
  %2788 = vst [vmem:[%s8 + $0xc0] sm:$0xff] %v2756
  %2789 = vst.msk [vmem:[%s8 + $0xc8] sm:$0xff] %vm1293, %v2757
  %2790 = vst [vmem:[%s8 + $0xd0] sm:$0xff] %v2758
  %2791 = vst.msk [vmem:[%s8 + $0xd8] sm:$0xff] %vm1293, %v2759
  %2792 = vst [vmem:[%s8 + $0xe0] sm:$0xff] %v2760
  %2793 = vst.msk [vmem:[%s8 + $0xe8] sm:$0xff] %vm1293, %v2761
  %2794 = vst [vmem:[%s8 + $0xf0] sm:$0xff] %v2762
  %2795 = vst.msk [vmem:[%s8 + $0xf8] sm:$0xff] %vm1293, %v2763
  // Predicated region
  $region30: #{tpu_custom_call.1} parent=0 // pred_check
    _
  $region31: #{tpu_custom_call.1} parent=0 // pred_check_branch
    %2797 = sbr.rel (0) target = $region33
  $region32: #{tpu_custom_call.1} parent=0 // pred_region
    _
  $region33: #{tpu_custom_call.1} parent=0 // pred_fallthru
    _
  // Predicated region
  $region34: #{tpu_custom_call.1} parent=0 // pred_check
    _
  $region35: #{tpu_custom_call.1} parent=0 // pred_check_branch
    %2799 = sbr.rel (0) target = $region37
  $region36: #{tpu_custom_call.1} parent=0 // pred_region
    _
  $region37: #{tpu_custom_call.1} parent=0 // pred_fallthru
    _
  // Predicated region
  $region38: #{tpu_custom_call.1} parent=0 // pred_check
    _
  $region39: #{tpu_custom_call.1} parent=0 // pred_check_branch
    %2801 = sbr.rel (0) target = $region41
  $region40: #{tpu_custom_call.1} parent=0 // pred_region
    _
  $region41: #{tpu_custom_call.1} parent=0 // pred_fallthru
    _
  // Predicated region
  $region42: #{tpu_custom_call.1} parent=0 // pred_check
    _
  $region43: #{tpu_custom_call.1} parent=0 // pred_check_branch
    %2803 = sbr.rel (0) target = $region45
  $region44: #{tpu_custom_call.1} parent=0 // pred_region
    _
  $region45: #{tpu_custom_call.1} parent=0 // pred_fallthru
    _

</llo_original>
